<compile_context>
chip_gen: v7x
topology: tpu7x:2x2x1
jax: 0.10.0
libtpu: 0.0.40
codegen_flags: <defaults>
</compile_context>

<pallas_src>
import jax
import jax.numpy as jnp
from jax.experimental import pallas as pl
from jax.experimental.pallas import tpu as pltpu

F_IN = 784
F_PAD = 896          # 7 * 128: lane-aligned feature dim (do NOT pad further)
H4_PAD = 128         # fc4 out / fc5 in padded 64 -> 128 (full lane width)
N_CLASSES = 10
C_PAD = 128          # lane-dense output slab; real classes live in [:, :10]
NEG_INF = -1e30      # padding bias for fake classes -> exp() underflows to 0


def mlp_kernel(x_ref,
               w1_ref, b1_ref,
               w2_ref, b2_ref,
               w3_ref, b3_ref,
               w4_ref, b4_ref,
               w5_ref, b5_ref,
               out_ref):
    """One batch tile: 5 matmuls (bf16 in, fp32 accumulate) + ReLU + log_softmax."""

    def layer(h, w_ref, b_ref):
        acc = jnp.dot(h, w_ref[...], preferred_element_type=jnp.float32) + b_ref[...]
        return jnp.maximum(acc, 0.0).astype(jnp.bfloat16)

    h = x_ref[...]                      # (TM, 896) bf16
    h = layer(h, w1_ref, b1_ref)        # (TM, 512)
    h = layer(h, w2_ref, b2_ref)        # (TM, 256)
    h = layer(h, w3_ref, b3_ref)        # (TM, 128)
    h = layer(h, w4_ref, b4_ref)        # (TM, 128) -- cols 64.. are zeros

    # fc5 -> log_softmax.  Class dim is padded to 128; padded columns have
    # zero weights and -1e30 bias, so they contribute exp(...) == 0 and do
    # not affect the max or the log-sum-exp over the 10 real classes.
    # fc5's K rows 64.. are zero, so the padded fc4 columns are inert too.
    logits = jnp.dot(h, w5_ref[...], preferred_element_type=jnp.float32) + b5_ref[...]
    m = jnp.max(logits, axis=-1, keepdims=True)
    shifted = logits - m
    lse = jnp.log(jnp.sum(jnp.exp(shifted), axis=-1, keepdims=True))
    out_ref[...] = (shifted - lse).astype(out_ref.dtype)   # (TM, 128) lane-dense store


def _round_up(n, m):
    return ((n + m - 1) // m) * m


def pack_params(params):
    """Turn fp32 PyTorch-style params into kernel-ready operands (do once):
    bf16 weights (fc1 K-padded 784->896, fc4 N-padded 64->128,
    fc5 K-padded 64->128 and N-padded 10->128), fp32 biases
    (fc4 zero-padded, fc5 padded with -1e30 on the fake classes)."""
    ops = []
    for name in ("fc1", "fc2", "fc3", "fc4", "fc5"):
        w, b = params[name]
        if name == "fc1":
            w = jnp.pad(w, ((0, F_PAD - F_IN), (0, 0)))           # zero K rows: no-op math
        if name == "fc4":
            w = jnp.pad(w, ((0, 0), (0, H4_PAD - 64)))            # zero output cols
            b = jnp.pad(b, ((0, 0), (0, H4_PAD - 64)))            # zero bias -> relu(0)=0
        if name == "fc5":
            w = jnp.pad(w, ((0, H4_PAD - 64), (0, C_PAD - N_CLASSES)))  # zero K rows + cols
            b = jnp.concatenate(
                [b, jnp.full((1, C_PAD - N_CLASSES), NEG_INF, jnp.float32)], axis=1)
        ops.append(w.astype(jnp.bfloat16))
        ops.append(b.astype(jnp.float32))
    return tuple(ops)


def _choose_tm(B, desired=512):
    """Tile choice: big tiles to amortize per-step overhead, but >=2 grid
    steps for moderate batches so v7x's two TensorCores can split the grid."""
    if B <= 8:
        return _round_up(B, 8)
    return max(8, min(desired, _round_up((B + 1) // 2, 8)))


def classifier_forward(x, packed_params, *, tm=None,
                       out_dtype=jnp.float32, slice_output=True):
    """x: [B, 784] float32 (or pre-padded [B, 896] bfloat16).
    packed_params: output of pack_params().
    Returns [B, 10] log-probabilities (or the padded [Bp, 128] slab if
    slice_output=False, letting a downstream consumer fuse the slice)."""
    B, f = x.shape

    if tm is None:
        tm = _choose_tm(B)
    Bp = _round_up(B, tm)

    # Cast to bf16 BEFORE padding (no fp32 padded intermediate); accept a
    # pre-padded bf16 input to skip the pad/cast entirely on repeated calls.
    if x.dtype == jnp.bfloat16 and f == F_PAD:
        xp = x if Bp == B else jnp.pad(x, ((0, Bp - B), (0, 0)))
    else:
        assert f == F_IN, f"expected {F_IN} or pre-padded {F_PAD} features, got {f}"
        xp = jnp.pad(x.astype(jnp.bfloat16), ((0, Bp - B), (0, F_PAD - F_IN)))

    # x/out are tiled along the batch grid; every weight/bias is a full-array
    # block with a constant index_map (VMEM-resident across all grid steps)
    # and Buffered(1) so no useless double-buffer copy is allocated.
    in_specs = [pl.BlockSpec((tm, F_PAD), lambda i: (i, 0))]
    for op in packed_params:
        in_specs.append(pl.BlockSpec(op.shape, lambda i: (0, 0),
                                     pipeline_mode=pl.Buffered(1)))
    out_specs = pl.BlockSpec((tm, C_PAD), lambda i: (i, 0))

    out = pl.pallas_call(
        mlp_kernel,
        grid=(Bp // tm,),
        in_specs=in_specs,
        out_specs=out_specs,
        out_shape=jax.ShapeDtypeStruct((Bp, C_PAD), out_dtype),
        compiler_params=pltpu.CompilerParams(
            dimension_semantics=("parallel",),      # 2 TCs on v7x share the batch axis
            vmem_limit_bytes=32 * 1024 * 1024,      # headroom for big tiles on v5e
        ),
    )(xp, *packed_params)

    if slice_output:
        return out[:B, :N_CLASSES]
    return out


def init_params(key):
    """Deterministic init mimicking PyTorch's default nn.Linear init
    (uniform in +/- 1/sqrt(fan_in)).  Stored [in, out] so y = x @ W + b."""
    dims = [(784, 512), (512, 256), (256, 128), (128, 64), (64, 10)]
    names = ("fc1", "fc2", "fc3", "fc4", "fc5")
    params = {}
    for name, (fan_in, fan_out) in zip(names, dims):
        key, kw, kb = jax.random.split(key, 3)
        bound = 1.0 / (fan_in ** 0.5)
        w = jax.random.uniform(kw, (fan_in, fan_out), jnp.float32, -bound, bound)
        b = jax.random.uniform(kb, (1, fan_out), jnp.float32, -bound, bound)
        params[name] = (w, b)
    return params


def reference_forward(x, params):
    """Plain-JAX reference using the same bf16-weight / fp32-accumulate math."""
    h = x.astype(jnp.bfloat16)
    for name in ("fc1", "fc2", "fc3", "fc4"):
        w, b = params[name]
        acc = jnp.dot(h, w.astype(jnp.bfloat16),
                      preferred_element_type=jnp.float32) + b
        h = jnp.maximum(acc, 0.0).astype(jnp.bfloat16)
    w, b = params["fc5"]
    logits = jnp.dot(h, w.astype(jnp.bfloat16),
                     preferred_element_type=jnp.float32) + b
    return jax.nn.log_softmax(logits, axis=1)


if __name__ == "__main__":
    key = jax.random.PRNGKey(0)
    key, kx = jax.random.split(key)

    params = init_params(key)
    packed = pack_params(params)

    def check(x, out):
        ref = reference_forward(x, params)
        assert out.shape == ref.shape
        assert jnp.allclose(out, ref, atol=1e-2, rtol=1e-2), (
            f"max abs err {jnp.max(jnp.abs(out - ref))}")

    # Small batch: single batch tile (tiny-B path, tm=8).
    B = 8
    x = jax.random.normal(kx, (B, F_IN), dtype=jnp.float32)
    out = jax.block_until_ready(classifier_forward(x, packed))
    check(x, out)

    # Ragged batch with explicit small tile: multi-tile grid + batch padding.
    B2 = 40
    x2 = jax.random.normal(jax.random.PRNGKey(1), (B2, F_IN), dtype=jnp.float32)
    out2 = jax.block_until_ready(classifier_forward(x2, packed, tm=16))
    check(x2, out2)

    # Default tile selection path (tm = round_up(B/2, 8) -> 2 grid steps).
    B3 = 200
    x3 = jax.random.normal(jax.random.PRNGKey(2), (B3, F_IN), dtype=jnp.float32)
    out3 = jax.block_until_ready(classifier_forward(x3, packed))
    check(x3, out3)

    print("KERNEL_OK")
</pallas_src>

<mosaic_0001>
module attributes {stable_mosaic.version = 11 : i64} {
  func.func @mlp_kernel(%arg0: i32, %arg1: memref<8x896xbf16, #tpu.memory_space<vmem>>, %arg2: memref<896x512xbf16, #tpu.memory_space<vmem>>, %arg3: memref<1x512xf32, #tpu.memory_space<vmem>>, %arg4: memref<512x256xbf16, #tpu.memory_space<vmem>>, %arg5: memref<1x256xf32, #tpu.memory_space<vmem>>, %arg6: memref<256x128xbf16, #tpu.memory_space<vmem>>, %arg7: memref<1x128xf32, #tpu.memory_space<vmem>>, %arg8: memref<128x128xbf16, #tpu.memory_space<vmem>>, %arg9: memref<1x128xf32, #tpu.memory_space<vmem>>, %arg10: memref<128x128xbf16, #tpu.memory_space<vmem>>, %arg11: memref<1x128xf32, #tpu.memory_space<vmem>>, %arg12: memref<8x128xf32, #tpu.memory_space<vmem>>) attributes {dimension_semantics = [#tpu.dimension_semantics<parallel>], iteration_bounds = array<i64: 1>, scalar_prefetch = 0 : i64, scratch_operands = 0 : i64, tpu.core_type = #tpu.core_type<tc>, window_params = [{transform_indices = @transform_0, window_bounds = array<i64: 8, 896>}, {pipeline_mode = #tpu.pipeline_mode<synchronous>, transform_indices = @transform_1, window_bounds = array<i64: 896, 512>}, {pipeline_mode = #tpu.pipeline_mode<synchronous>, transform_indices = @transform_2, window_bounds = array<i64: 1, 512>}, {pipeline_mode = #tpu.pipeline_mode<synchronous>, transform_indices = @transform_3, window_bounds = array<i64: 512, 256>}, {pipeline_mode = #tpu.pipeline_mode<synchronous>, transform_indices = @transform_4, window_bounds = array<i64: 1, 256>}, {pipeline_mode = #tpu.pipeline_mode<synchronous>, transform_indices = @transform_5, window_bounds = array<i64: 256, 128>}, {pipeline_mode = #tpu.pipeline_mode<synchronous>, transform_indices = @transform_6, window_bounds = array<i64: 1, 128>}, {pipeline_mode = #tpu.pipeline_mode<synchronous>, transform_indices = @transform_7, window_bounds = array<i64: 128, 128>}, {pipeline_mode = #tpu.pipeline_mode<synchronous>, transform_indices = @transform_8, window_bounds = array<i64: 1, 128>}, {pipeline_mode = #tpu.pipeline_mode<synchronous>, transform_indices = @transform_9, window_bounds = array<i64: 128, 128>}, {pipeline_mode = #tpu.pipeline_mode<synchronous>, transform_indices = @transform_10, window_bounds = array<i64: 1, 128>}, {transform_indices = @transform_11, window_bounds = array<i64: 8, 128>}]} {
    %c0 = arith.constant 0 : index
    %c0_0 = arith.constant 0 : index
    %0 = vector.load %arg1[%c0, %c0_0] : memref<8x896xbf16, #tpu.memory_space<vmem>>, vector<8x896xbf16>
    %c0_1 = arith.constant 0 : index
    %c0_2 = arith.constant 0 : index
    %1 = vector.load %arg2[%c0_1, %c0_2] : memref<896x512xbf16, #tpu.memory_space<vmem>>, vector<896x512xbf16>
    %cst = arith.constant dense<0.000000e+00> : vector<8x512xf32>
    %2 = tpu.matmul %0, %1, %cst {dimension_numbers = #tpu.dot_dimension_numbers<[1], [0], [0], [1], [0, 0, 1, 1], [], []>} : vector<8x896xbf16>, vector<896x512xbf16>, vector<8x512xf32> -> vector<8x512xf32>
    %c0_3 = arith.constant 0 : index
    %c0_4 = arith.constant 0 : index
    %3 = vector.load %arg3[%c0_3, %c0_4] : memref<1x512xf32, #tpu.memory_space<vmem>>, vector<1x512xf32>
    %4 = vector.broadcast %3 : vector<1x512xf32> to vector<8x512xf32>
    %5 = arith.addf %2, %4 : vector<8x512xf32>
    %cst_5 = arith.constant 0.000000e+00 : f32
    %6 = vector.broadcast %cst_5 : f32 to vector<8x512xf32>
    %7 = arith.maximumf %5, %6 : vector<8x512xf32>
    %8 = arith.truncf %7 : vector<8x512xf32> to vector<8x512xbf16>
    %c0_6 = arith.constant 0 : index
    %c0_7 = arith.constant 0 : index
    %9 = vector.load %arg4[%c0_6, %c0_7] : memref<512x256xbf16, #tpu.memory_space<vmem>>, vector<512x256xbf16>
    %cst_8 = arith.constant dense<0.000000e+00> : vector<8x256xf32>
    %10 = tpu.matmul %8, %9, %cst_8 {dimension_numbers = #tpu.dot_dimension_numbers<[1], [0], [0], [1], [0, 0, 1, 1], [], []>} : vector<8x512xbf16>, vector<512x256xbf16>, vector<8x256xf32> -> vector<8x256xf32>
    %c0_9 = arith.constant 0 : index
    %c0_10 = arith.constant 0 : index
    %11 = vector.load %arg5[%c0_9, %c0_10] : memref<1x256xf32, #tpu.memory_space<vmem>>, vector<1x256xf32>
    %12 = vector.broadcast %11 : vector<1x256xf32> to vector<8x256xf32>
    %13 = arith.addf %10, %12 : vector<8x256xf32>
    %cst_11 = arith.constant 0.000000e+00 : f32
    %14 = vector.broadcast %cst_11 : f32 to vector<8x256xf32>
    %15 = arith.maximumf %13, %14 : vector<8x256xf32>
    %16 = arith.truncf %15 : vector<8x256xf32> to vector<8x256xbf16>
    %c0_12 = arith.constant 0 : index
    %c0_13 = arith.constant 0 : index
    %17 = vector.load %arg6[%c0_12, %c0_13] : memref<256x128xbf16, #tpu.memory_space<vmem>>, vector<256x128xbf16>
    %cst_14 = arith.constant dense<0.000000e+00> : vector<8x128xf32>
    %18 = tpu.matmul %16, %17, %cst_14 {dimension_numbers = #tpu.dot_dimension_numbers<[1], [0], [0], [1], [0, 0, 1, 1], [], []>} : vector<8x256xbf16>, vector<256x128xbf16>, vector<8x128xf32> -> vector<8x128xf32>
    %c0_15 = arith.constant 0 : index
    %c0_16 = arith.constant 0 : index
    %19 = vector.load %arg7[%c0_15, %c0_16] : memref<1x128xf32, #tpu.memory_space<vmem>>, vector<1x128xf32>
    %20 = vector.broadcast %19 : vector<1x128xf32> to vector<8x128xf32>
    %21 = arith.addf %18, %20 : vector<8x128xf32>
    %cst_17 = arith.constant 0.000000e+00 : f32
    %22 = vector.broadcast %cst_17 : f32 to vector<8x128xf32>
    %23 = arith.maximumf %21, %22 : vector<8x128xf32>
    %24 = arith.truncf %23 : vector<8x128xf32> to vector<8x128xbf16>
    %c0_18 = arith.constant 0 : index
    %c0_19 = arith.constant 0 : index
    %25 = vector.load %arg8[%c0_18, %c0_19] : memref<128x128xbf16, #tpu.memory_space<vmem>>, vector<128x128xbf16>
    %cst_20 = arith.constant dense<0.000000e+00> : vector<8x128xf32>
    %26 = tpu.matmul %24, %25, %cst_20 {dimension_numbers = #tpu.dot_dimension_numbers<[1], [0], [0], [1], [0, 0, 1, 1], [], []>} : vector<8x128xbf16>, vector<128x128xbf16>, vector<8x128xf32> -> vector<8x128xf32>
    %c0_21 = arith.constant 0 : index
    %c0_22 = arith.constant 0 : index
    %27 = vector.load %arg9[%c0_21, %c0_22] : memref<1x128xf32, #tpu.memory_space<vmem>>, vector<1x128xf32>
    %28 = vector.broadcast %27 : vector<1x128xf32> to vector<8x128xf32>
    %29 = arith.addf %26, %28 : vector<8x128xf32>
    %cst_23 = arith.constant 0.000000e+00 : f32
    %30 = vector.broadcast %cst_23 : f32 to vector<8x128xf32>
    %31 = arith.maximumf %29, %30 : vector<8x128xf32>
    %32 = arith.truncf %31 : vector<8x128xf32> to vector<8x128xbf16>
    %c0_24 = arith.constant 0 : index
    %c0_25 = arith.constant 0 : index
    %33 = vector.load %arg10[%c0_24, %c0_25] : memref<128x128xbf16, #tpu.memory_space<vmem>>, vector<128x128xbf16>
    %cst_26 = arith.constant dense<0.000000e+00> : vector<8x128xf32>
    %34 = tpu.matmul %32, %33, %cst_26 {dimension_numbers = #tpu.dot_dimension_numbers<[1], [0], [0], [1], [0, 0, 1, 1], [], []>} : vector<8x128xbf16>, vector<128x128xbf16>, vector<8x128xf32> -> vector<8x128xf32>
    %c0_27 = arith.constant 0 : index
    %c0_28 = arith.constant 0 : index
    %35 = vector.load %arg11[%c0_27, %c0_28] : memref<1x128xf32, #tpu.memory_space<vmem>>, vector<1x128xf32>
    %36 = vector.broadcast %35 : vector<1x128xf32> to vector<8x128xf32>
    %37 = arith.addf %34, %36 : vector<8x128xf32>
    %cst_29 = arith.constant dense<0xFF800000> : vector<8xf32>
    %38 = vector.multi_reduction <maximumf>, %37, %cst_29 [1] : vector<8x128xf32> to vector<8xf32>
    %39 = vector.shape_cast %38 : vector<8xf32> to vector<8x1xf32>
    %40 = vector.broadcast %39 : vector<8x1xf32> to vector<8x128xf32>
    %41 = arith.subf %37, %40 : vector<8x128xf32>
    %42 = math.exp %41 : vector<8x128xf32>
    %cst_30 = arith.constant dense<0.000000e+00> : vector<8xf32>
    %43 = vector.multi_reduction <add>, %42, %cst_30 [1] : vector<8x128xf32> to vector<8xf32>
    %44 = vector.shape_cast %43 : vector<8xf32> to vector<8x1xf32>
    %45 = math.log %44 : vector<8x1xf32>
    %46 = vector.broadcast %45 : vector<8x1xf32> to vector<8x128xf32>
    %47 = arith.subf %41, %46 : vector<8x128xf32>
    %c0_31 = arith.constant 0 : index
    %c0_32 = arith.constant 0 : index
    %48 = vector.load %arg12[%c0_31, %c0_32] : memref<8x128xf32, #tpu.memory_space<vmem>>, vector<8x128xf32>
    tpu.vector_store %arg12[%c0_31, %c0_32], %47 {strides = array<i32>} : memref<8x128xf32, #tpu.memory_space<vmem>>, vector<8x128xf32>,
    return
  }
  func.func @transform_0(%arg0: i32) -> (i32, i32) {
    %c0_i32 = arith.constant 0 : i32
    %c0_i32_0 = arith.constant 0 : i32
    return %arg0, %c0_i32 : i32, i32
  }
  func.func @transform_1(%arg0: i32) -> (i32, i32) {
    %c0_i32 = arith.constant 0 : i32
    %c0_i32_0 = arith.constant 0 : i32
    %c0_i32_1 = arith.constant 0 : i32
    return %c0_i32, %c0_i32_0 : i32, i32
  }
  func.func @transform_2(%arg0: i32) -> (i32, i32) {
    %c0_i32 = arith.constant 0 : i32
    %c0_i32_0 = arith.constant 0 : i32
    %c0_i32_1 = arith.constant 0 : i32
    return %c0_i32, %c0_i32_0 : i32, i32
  }
  func.func @transform_3(%arg0: i32) -> (i32, i32) {
    %c0_i32 = arith.constant 0 : i32
    %c0_i32_0 = arith.constant 0 : i32
    %c0_i32_1 = arith.constant 0 : i32
    return %c0_i32, %c0_i32_0 : i32, i32
  }
  func.func @transform_4(%arg0: i32) -> (i32, i32) {
    %c0_i32 = arith.constant 0 : i32
    %c0_i32_0 = arith.constant 0 : i32
    %c0_i32_1 = arith.constant 0 : i32
    return %c0_i32, %c0_i32_0 : i32, i32
  }
  func.func @transform_5(%arg0: i32) -> (i32, i32) {
    %c0_i32 = arith.constant 0 : i32
    %c0_i32_0 = arith.constant 0 : i32
    %c0_i32_1 = arith.constant 0 : i32
    return %c0_i32, %c0_i32_0 : i32, i32
  }
  func.func @transform_6(%arg0: i32) -> (i32, i32) {
    %c0_i32 = arith.constant 0 : i32
    %c0_i32_0 = arith.constant 0 : i32
    %c0_i32_1 = arith.constant 0 : i32
    return %c0_i32, %c0_i32_0 : i32, i32
  }
  func.func @transform_7(%arg0: i32) -> (i32, i32) {
    %c0_i32 = arith.constant 0 : i32
    %c0_i32_0 = arith.constant 0 : i32
    %c0_i32_1 = arith.constant 0 : i32
    return %c0_i32, %c0_i32_0 : i32, i32
  }
  func.func @transform_8(%arg0: i32) -> (i32, i32) {
    %c0_i32 = arith.constant 0 : i32
    %c0_i32_0 = arith.constant 0 : i32
    %c0_i32_1 = arith.constant 0 : i32
    return %c0_i32, %c0_i32_0 : i32, i32
  }
  func.func @transform_9(%arg0: i32) -> (i32, i32) {
    %c0_i32 = arith.constant 0 : i32
    %c0_i32_0 = arith.constant 0 : i32
    %c0_i32_1 = arith.constant 0 : i32
    return %c0_i32, %c0_i32_0 : i32, i32
  }
  func.func @transform_10(%arg0: i32) -> (i32, i32) {
    %c0_i32 = arith.constant 0 : i32
    %c0_i32_0 = arith.constant 0 : i32
    %c0_i32_1 = arith.constant 0 : i32
    return %c0_i32, %c0_i32_0 : i32, i32
  }
  func.func @transform_11(%arg0: i32) -> (i32, i32) {
    %c0_i32 = arith.constant 0 : i32
    %c0_i32_0 = arith.constant 0 : i32
    return %arg0, %c0_i32 : i32, i32
  }
}

</mosaic_0001>

<llo_original>
// kernel: tpu_custom_call.1
$region0: #{tpu_custom_call.1}
  #allocation0 [shape = 'u32[]', space=smem, size = 0x4, offset = 0x4, fixed_abs, tag = 'smem constant byte address 0x4 - core index']
  #allocation1 [shape = 'u32[144,128]{1,0:T(1,128)}', space=vmem, size = 0x12000, scoped, tag = 'internal scratch']
  %s0 = inlined_call_operand.hbm [shape: bf16[8,896], index: 0, kind: input, shape index: {}]
  %s1 = inlined_call_operand.hbm [shape: bf16[896,512], index: 1, kind: input, shape index: {}]
  %s2 = inlined_call_operand.vmem [shape: f32[1,512], index: 2, kind: input, shape index: {}]
  %s3 = inlined_call_operand.hbm [shape: bf16[512,256], index: 3, kind: input, shape index: {}]
  %s4 = inlined_call_operand.vmem [shape: f32[1,256], index: 4, kind: input, shape index: {}]
  %s5 = inlined_call_operand.hbm [shape: bf16[256,128], index: 5, kind: input, shape index: {}]
  %s6 = inlined_call_operand.vmem [shape: f32[1,128], index: 6, kind: input, shape index: {}]
  %s7 = inlined_call_operand.hbm [shape: bf16[128,128], index: 7, kind: input, shape index: {}]
  %s8 = inlined_call_operand.vmem [shape: f32[1,128], index: 8, kind: input, shape index: {}]
  %s9 = inlined_call_operand.hbm [shape: bf16[128,128], index: 9, kind: input, shape index: {}]
  %s10 = inlined_call_operand.vmem [shape: f32[1,128], index: 10, kind: input, shape index: {}]
  %s11 = inlined_call_operand.hbm [shape: f32[8,128], index: 11, kind: output, shape index: {}]
  %s12 = sld [smem:[#allocation0]]
  $region78: #{tpu_custom_call.1} parent=0
    _
  %s14 = ssub.s32 1, %s12
  %s15 = scalar_select 0, %s14, %s12
  $region1: #{tpu_custom_call.1} parent=0
    #allocation2 [shape = 'u8[14336]{0}', space=vmem, size = 0x3800, scoped, tag = 'input window, operand 0, single buffered']
    #allocation3 [shape = 's32[1]{0}', space=sflag, size = 0x4, scoped, tag = 'scoped memory for tpu_custom_call.1']
    #allocation4 [shape = 's32[1]{0}', space=sflag, size = 0x4, scoped, tag = 'scoped memory for tpu_custom_call.1']
    #allocation5 [shape = 'u8[917504]{0}', space=vmem, size = 0xe0000, scoped, tag = 'input window, operand 1, single buffered']
    #allocation6 [shape = 's32[1]{0}', space=sflag, size = 0x4, scoped, tag = 'scoped memory for tpu_custom_call.1']
    #allocation7 [shape = 'u8[262144]{0}', space=vmem, size = 0x40000, scoped, tag = 'input window, operand 3, single buffered']
    #allocation8 [shape = 'u8[65536]{0}', space=vmem, size = 0x10000, scoped, tag = 'input window, operand 5, single buffered']
    #allocation9 [shape = 's32[1]{0}', space=sflag, size = 0x4, scoped, tag = 'scoped memory for tpu_custom_call.1']
    #allocation10 [shape = 'u8[32768]{0}', space=vmem, size = 0x8000, scoped, tag = 'input window, operand 7, single buffered']
    #allocation11 [shape = 'u8[32768]{0}', space=vmem, size = 0x8000, scoped, tag = 'input window, operand 9, single buffered']
    #allocation12 [shape = 's32[1]{0}', space=sflag, size = 0x4, scoped, tag = 'scoped memory for tpu_custom_call.1']
    #allocation13 [shape = 'u8[4096]{0}', space=vmem, size = 0x1000, scoped, tag = 'output window, operand 0, single buffered']
    %16 = vsyncpa [#allocation3], 0
    %17 = vsyncpa [#allocation6], 0
    %18 = vsyncpa [#allocation9], 0
    %19 = vsyncpa [#allocation12], 0
    %20 = vsyncpa [#allocation4], 0
    // Predicated region
    $region2: #{tpu_custom_call.1} parent=1 // pred_check
      _
    $region3: #{tpu_custom_call.1} parent=1 // pred_check_branch
      %22 = sbr.rel (0) target = $region5
    $region4: #{tpu_custom_call.1} parent=1 // pred_region
      %s24 = ssub.s32 448, 448
      %25 = vsyncadd [#allocation3], %s24
      %s27 = sshll.u32 [#allocation2], 4
      %s28 = int_to_ptr.vmem [resolvable:$true] %s27
      %30 = dma.hbm_to_vmem [thread:$0]  %s0, 448, %s28, [#allocation3]
    $region5: #{tpu_custom_call.1} parent=1 // pred_fallthru
      _
    // Predicated region
    $region6: #{tpu_custom_call.1} parent=1 // pred_check
      _
    $region7: #{tpu_custom_call.1} parent=1 // pred_check_branch
      %32 = sbr.rel (0) target = $region9
    $region8: #{tpu_custom_call.1} parent=1 // pred_region
      %s34 = ssub.s32 28672, 28672
      %35 = vsyncadd [#allocation6], %s34
      %s36 = sshll.u32 [#allocation5], 4
      %s37 = int_to_ptr.vmem [resolvable:$true] %s36
      %42 = dma.hbm_to_vmem [thread:$0]  %s1, 28672, %s37, [#allocation6], 256, 256, 16
    $region9: #{tpu_custom_call.1} parent=1 // pred_fallthru
      _
    // Predicated region
    $region10: #{tpu_custom_call.1} parent=1 // pred_check
      _
    $region11: #{tpu_custom_call.1} parent=1 // pred_check_branch
      %44 = sbr.rel (0) target = $region13
    $region12: #{tpu_custom_call.1} parent=1 // pred_region
      _
    $region13: #{tpu_custom_call.1} parent=1 // pred_fallthru
      _
    // Predicated region
    $region14: #{tpu_custom_call.1} parent=1 // pred_check
      _
    $region15: #{tpu_custom_call.1} parent=1 // pred_check_branch
      %46 = sbr.rel (0) target = $region17
    $region16: #{tpu_custom_call.1} parent=1 // pred_region
      %s48 = ssub.s32 8192, 8192
      %49 = vsyncadd [#allocation6], %s48
      %s50 = sshll.u32 [#allocation7], 4
      %s51 = int_to_ptr.vmem [resolvable:$true] %s50
      %56 = dma.hbm_to_vmem [thread:$0]  %s3, 8192, %s51, [#allocation6], 128, 128, 8
    $region17: #{tpu_custom_call.1} parent=1 // pred_fallthru
      _
    // Predicated region
    $region18: #{tpu_custom_call.1} parent=1 // pred_check
      _
    $region19: #{tpu_custom_call.1} parent=1 // pred_check_branch
      %58 = sbr.rel (0) target = $region21
    $region20: #{tpu_custom_call.1} parent=1 // pred_region
      _
    $region21: #{tpu_custom_call.1} parent=1 // pred_fallthru
      _
    // Predicated region
    $region22: #{tpu_custom_call.1} parent=1 // pred_check
      _
    $region23: #{tpu_custom_call.1} parent=1 // pred_check_branch
      %60 = sbr.rel (0) target = $region25
    $region24: #{tpu_custom_call.1} parent=1 // pred_region
      %s62 = ssub.s32 2048, 2048
      %63 = vsyncadd [#allocation9], %s62
      %s64 = sshll.u32 [#allocation8], 4
      %s65 = int_to_ptr.vmem [resolvable:$true] %s64
      %70 = dma.hbm_to_vmem [thread:$0]  %s5, 2048, %s65, [#allocation9], 64, 64, 4
    $region25: #{tpu_custom_call.1} parent=1 // pred_fallthru
      _
    // Predicated region
    $region26: #{tpu_custom_call.1} parent=1 // pred_check
      _
    $region27: #{tpu_custom_call.1} parent=1 // pred_check_branch
      %72 = sbr.rel (0) target = $region29
    $region28: #{tpu_custom_call.1} parent=1 // pred_region
      _
    $region29: #{tpu_custom_call.1} parent=1 // pred_fallthru
      _
    // Predicated region
    $region30: #{tpu_custom_call.1} parent=1 // pred_check
      _
    $region31: #{tpu_custom_call.1} parent=1 // pred_check_branch
      %74 = sbr.rel (0) target = $region33
    $region32: #{tpu_custom_call.1} parent=1 // pred_region
      %s76 = ssub.s32 1024, 1024
      %77 = vsyncadd [#allocation9], %s76
      %s78 = sshll.u32 [#allocation10], 4
      %s79 = int_to_ptr.vmem [resolvable:$true] %s78
      %84 = dma.hbm_to_vmem [thread:$0]  %s7, 1024, %s79, [#allocation9], 64, 64, 4
    $region33: #{tpu_custom_call.1} parent=1 // pred_fallthru
      _
    // Predicated region
    $region34: #{tpu_custom_call.1} parent=1 // pred_check
      _
    $region35: #{tpu_custom_call.1} parent=1 // pred_check_branch
      %86 = sbr.rel (0) target = $region37
    $region36: #{tpu_custom_call.1} parent=1 // pred_region
      _
    $region37: #{tpu_custom_call.1} parent=1 // pred_fallthru
      _
    // Predicated region
    $region38: #{tpu_custom_call.1} parent=1 // pred_check
      _
    $region39: #{tpu_custom_call.1} parent=1 // pred_check_branch
      %88 = sbr.rel (0) target = $region41
    $region40: #{tpu_custom_call.1} parent=1 // pred_region
      %s90 = ssub.s32 1024, 1024
      %91 = vsyncadd [#allocation12], %s90
      %s92 = sshll.u32 [#allocation11], 4
      %s93 = int_to_ptr.vmem [resolvable:$true] %s92
      %98 = dma.hbm_to_vmem [thread:$0]  %s9, 1024, %s93, [#allocation12], 64, 64, 4
    $region41: #{tpu_custom_call.1} parent=1 // pred_fallthru
      _
    // Predicated region
    $region42: #{tpu_custom_call.1} parent=1 // pred_check
      _
    $region43: #{tpu_custom_call.1} parent=1 // pred_check_branch
      %100 = sbr.rel (0) target = $region45
    $region44: #{tpu_custom_call.1} parent=1 // pred_region
      _
    $region45: #{tpu_custom_call.1} parent=1 // pred_fallthru
      _
    // Predicated region
    $region46: #{tpu_custom_call.1} parent=1 // pred_check
      _
    $region47: #{tpu_custom_call.1} parent=1 // pred_check_branch
      %102 = sbr.rel (0) target = $region49
    $region48: #{tpu_custom_call.1} parent=1 // pred_region
      %103 = dma.done [#allocation3], 448
    $region49: #{tpu_custom_call.1} parent=1 // pred_fallthru
      _
    // Predicated region
    $region50: #{tpu_custom_call.1} parent=1 // pred_check
      _
    $region51: #{tpu_custom_call.1} parent=1 // pred_check_branch
      %105 = sbr.rel (0) target = $region53
    $region52: #{tpu_custom_call.1} parent=1 // pred_region
      %106 = dma.done [#allocation6], 28672
    $region53: #{tpu_custom_call.1} parent=1 // pred_fallthru
      _
    // Predicated region
    $region54: #{tpu_custom_call.1} parent=1 // pred_check
      _
    $region55: #{tpu_custom_call.1} parent=1 // pred_check_branch
      %108 = sbr.rel (0) target = $region57
    $region56: #{tpu_custom_call.1} parent=1 // pred_region
      %109 = dma.done [#allocation6], 8192
    $region57: #{tpu_custom_call.1} parent=1 // pred_fallthru
      _
    // Predicated region
    $region58: #{tpu_custom_call.1} parent=1 // pred_check
      _
    $region59: #{tpu_custom_call.1} parent=1 // pred_check_branch
      %111 = sbr.rel (0) target = $region61
    $region60: #{tpu_custom_call.1} parent=1 // pred_region
      %112 = dma.done [#allocation9], 2048
    $region61: #{tpu_custom_call.1} parent=1 // pred_fallthru
      _
    // Predicated region
    $region62: #{tpu_custom_call.1} parent=1 // pred_check
      _
    $region63: #{tpu_custom_call.1} parent=1 // pred_check_branch
      %114 = sbr.rel (0) target = $region65
    $region64: #{tpu_custom_call.1} parent=1 // pred_region
      %115 = dma.done [#allocation9], 1024
    $region65: #{tpu_custom_call.1} parent=1 // pred_fallthru
      _
    // Predicated region
    $region66: #{tpu_custom_call.1} parent=1 // pred_check
      _
    $region67: #{tpu_custom_call.1} parent=1 // pred_check_branch
      %117 = sbr.rel (0) target = $region69
    $region68: #{tpu_custom_call.1} parent=1 // pred_region
      %118 = dma.done [#allocation12], 1024
    $region69: #{tpu_custom_call.1} parent=1 // pred_fallthru
      _
    %v120 = vld [vmem:[#allocation2] sm:$0xff]
    %v121 = vld [vmem:[#allocation2 + $0x8] sm:$0xff]
    %v122 = vld [vmem:[#allocation2 + $0x10] sm:$0xff]
    %v123 = vld [vmem:[#allocation2 + $0x18] sm:$0xf]
    %v124 = vld [vmem:[#allocation5] sm:$0xff]
    %v125 = vld [vmem:[#allocation5 + $0x8] sm:$0xff]
    %v126 = vld [vmem:[#allocation5 + $0x10] sm:$0xff]
    %v127 = vld [vmem:[#allocation5 + $0x18] sm:$0xff]
    %v128 = vld [vmem:[#allocation5 + $0x20] sm:$0xff]
    %v129 = vld [vmem:[#allocation5 + $0x28] sm:$0xff]
    %v130 = vld [vmem:[#allocation5 + $0x30] sm:$0xff]
    %v131 = vld [vmem:[#allocation5 + $0x38] sm:$0xff]
    %v132 = vld [vmem:[#allocation5 + $0x40] sm:$0xff]
    %v133 = vld [vmem:[#allocation5 + $0x48] sm:$0xff]
    %v134 = vld [vmem:[#allocation5 + $0x50] sm:$0xff]
    %v135 = vld [vmem:[#allocation5 + $0x58] sm:$0xff]
    %v136 = vld [vmem:[#allocation5 + $0x60] sm:$0xff]
    %v137 = vld [vmem:[#allocation5 + $0x68] sm:$0xff]
    %v138 = vld [vmem:[#allocation5 + $0x70] sm:$0xff]
    %v139 = vld [vmem:[#allocation5 + $0x78] sm:$0xff]
    %v140 = vld [vmem:[#allocation5 + $0x80] sm:$0xff]
    %v141 = vld [vmem:[#allocation5 + $0x88] sm:$0xff]
    %v142 = vld [vmem:[#allocation5 + $0x90] sm:$0xff]
    %v143 = vld [vmem:[#allocation5 + $0x98] sm:$0xff]
    %v144 = vld [vmem:[#allocation5 + $0xa0] sm:$0xff]
    %v145 = vld [vmem:[#allocation5 + $0xa8] sm:$0xff]
    %v146 = vld [vmem:[#allocation5 + $0xb0] sm:$0xff]
    %v147 = vld [vmem:[#allocation5 + $0xb8] sm:$0xff]
    %v148 = vld [vmem:[#allocation5 + $0xc0] sm:$0xff]
    %v149 = vld [vmem:[#allocation5 + $0xc8] sm:$0xff]
    %v150 = vld [vmem:[#allocation5 + $0xd0] sm:$0xff]
    %v151 = vld [vmem:[#allocation5 + $0xd8] sm:$0xff]
    %v152 = vld [vmem:[#allocation5 + $0xe0] sm:$0xff]
    %v153 = vld [vmem:[#allocation5 + $0xe8] sm:$0xff]
    %v154 = vld [vmem:[#allocation5 + $0xf0] sm:$0xff]
    %v155 = vld [vmem:[#allocation5 + $0xf8] sm:$0xff]
    %v156 = vld [vmem:[#allocation5 + $0x100] sm:$0xff]
    %v157 = vld [vmem:[#allocation5 + $0x108] sm:$0xff]
    %v158 = vld [vmem:[#allocation5 + $0x110] sm:$0xff]
    %v159 = vld [vmem:[#allocation5 + $0x118] sm:$0xff]
    %v160 = vld [vmem:[#allocation5 + $0x120] sm:$0xff]
    %v161 = vld [vmem:[#allocation5 + $0x128] sm:$0xff]
    %v162 = vld [vmem:[#allocation5 + $0x130] sm:$0xff]
    %v163 = vld [vmem:[#allocation5 + $0x138] sm:$0xff]
    %v164 = vld [vmem:[#allocation5 + $0x140] sm:$0xff]
    %v165 = vld [vmem:[#allocation5 + $0x148] sm:$0xff]
    %v166 = vld [vmem:[#allocation5 + $0x150] sm:$0xff]
    %v167 = vld [vmem:[#allocation5 + $0x158] sm:$0xff]
    %v168 = vld [vmem:[#allocation5 + $0x160] sm:$0xff]
    %v169 = vld [vmem:[#allocation5 + $0x168] sm:$0xff]
    %v170 = vld [vmem:[#allocation5 + $0x170] sm:$0xff]
    %v171 = vld [vmem:[#allocation5 + $0x178] sm:$0xff]
    %v172 = vld [vmem:[#allocation5 + $0x180] sm:$0xff]
    %v173 = vld [vmem:[#allocation5 + $0x188] sm:$0xff]
    %v174 = vld [vmem:[#allocation5 + $0x190] sm:$0xff]
    %v175 = vld [vmem:[#allocation5 + $0x198] sm:$0xff]
    %v176 = vld [vmem:[#allocation5 + $0x1a0] sm:$0xff]
    %v177 = vld [vmem:[#allocation5 + $0x1a8] sm:$0xff]
    %v178 = vld [vmem:[#allocation5 + $0x1b0] sm:$0xff]
    %v179 = vld [vmem:[#allocation5 + $0x1b8] sm:$0xff]
    %v180 = vld [vmem:[#allocation5 + $0x1c0] sm:$0xff]
    %v181 = vld [vmem:[#allocation5 + $0x1c8] sm:$0xff]
    %v182 = vld [vmem:[#allocation5 + $0x1d0] sm:$0xff]
    %v183 = vld [vmem:[#allocation5 + $0x1d8] sm:$0xff]
    %v184 = vld [vmem:[#allocation5 + $0x1e0] sm:$0xff]
    %v185 = vld [vmem:[#allocation5 + $0x1e8] sm:$0xff]
    %v186 = vld [vmem:[#allocation5 + $0x1f0] sm:$0xff]
    %v187 = vld [vmem:[#allocation5 + $0x1f8] sm:$0xff]
    %v188 = vld [vmem:[#allocation5 + $0x200] sm:$0xff]
    %v189 = vld [vmem:[#allocation5 + $0x208] sm:$0xff]
    %v190 = vld [vmem:[#allocation5 + $0x210] sm:$0xff]
    %v191 = vld [vmem:[#allocation5 + $0x218] sm:$0xff]
    %v192 = vld [vmem:[#allocation5 + $0x220] sm:$0xff]
    %v193 = vld [vmem:[#allocation5 + $0x228] sm:$0xff]
    %v194 = vld [vmem:[#allocation5 + $0x230] sm:$0xff]
    %v195 = vld [vmem:[#allocation5 + $0x238] sm:$0xff]
    %v196 = vld [vmem:[#allocation5 + $0x240] sm:$0xff]
    %v197 = vld [vmem:[#allocation5 + $0x248] sm:$0xff]
    %v198 = vld [vmem:[#allocation5 + $0x250] sm:$0xff]
    %v199 = vld [vmem:[#allocation5 + $0x258] sm:$0xff]
    %v200 = vld [vmem:[#allocation5 + $0x260] sm:$0xff]
    %v201 = vld [vmem:[#allocation5 + $0x268] sm:$0xff]
    %v202 = vld [vmem:[#allocation5 + $0x270] sm:$0xff]
    %v203 = vld [vmem:[#allocation5 + $0x278] sm:$0xff]
    %v204 = vld [vmem:[#allocation5 + $0x280] sm:$0xff]
    %v205 = vld [vmem:[#allocation5 + $0x288] sm:$0xff]
    %v206 = vld [vmem:[#allocation5 + $0x290] sm:$0xff]
    %v207 = vld [vmem:[#allocation5 + $0x298] sm:$0xff]
    %v208 = vld [vmem:[#allocation5 + $0x2a0] sm:$0xff]
    %v209 = vld [vmem:[#allocation5 + $0x2a8] sm:$0xff]
    %v210 = vld [vmem:[#allocation5 + $0x2b0] sm:$0xff]
    %v211 = vld [vmem:[#allocation5 + $0x2b8] sm:$0xff]
    %v212 = vld [vmem:[#allocation5 + $0x2c0] sm:$0xff]
    %v213 = vld [vmem:[#allocation5 + $0x2c8] sm:$0xff]
    %v214 = vld [vmem:[#allocation5 + $0x2d0] sm:$0xff]
    %v215 = vld [vmem:[#allocation5 + $0x2d8] sm:$0xff]
    %v216 = vld [vmem:[#allocation5 + $0x2e0] sm:$0xff]
    %v217 = vld [vmem:[#allocation5 + $0x2e8] sm:$0xff]
    %v218 = vld [vmem:[#allocation5 + $0x2f0] sm:$0xff]
    %v219 = vld [vmem:[#allocation5 + $0x2f8] sm:$0xff]
    %v220 = vld [vmem:[#allocation5 + $0x300] sm:$0xff]
    %v221 = vld [vmem:[#allocation5 + $0x308] sm:$0xff]
    %v222 = vld [vmem:[#allocation5 + $0x310] sm:$0xff]
    %v223 = vld [vmem:[#allocation5 + $0x318] sm:$0xff]
    %v224 = vld [vmem:[#allocation5 + $0x320] sm:$0xff]
    %v225 = vld [vmem:[#allocation5 + $0x328] sm:$0xff]
    %v226 = vld [vmem:[#allocation5 + $0x330] sm:$0xff]
    %v227 = vld [vmem:[#allocation5 + $0x338] sm:$0xff]
    %v228 = vld [vmem:[#allocation5 + $0x340] sm:$0xff]
    %v229 = vld [vmem:[#allocation5 + $0x348] sm:$0xff]
    %v230 = vld [vmem:[#allocation5 + $0x350] sm:$0xff]
    %v231 = vld [vmem:[#allocation5 + $0x358] sm:$0xff]
    %v232 = vld [vmem:[#allocation5 + $0x360] sm:$0xff]
    %v233 = vld [vmem:[#allocation5 + $0x368] sm:$0xff]
    %v234 = vld [vmem:[#allocation5 + $0x370] sm:$0xff]
    %v235 = vld [vmem:[#allocation5 + $0x378] sm:$0xff]
    %v236 = vld [vmem:[#allocation5 + $0x380] sm:$0xff]
    %v237 = vld [vmem:[#allocation5 + $0x388] sm:$0xff]
    %v238 = vld [vmem:[#allocation5 + $0x390] sm:$0xff]
    %v239 = vld [vmem:[#allocation5 + $0x398] sm:$0xff]
    %v240 = vld [vmem:[#allocation5 + $0x3a0] sm:$0xff]
    %v241 = vld [vmem:[#allocation5 + $0x3a8] sm:$0xff]
    %v242 = vld [vmem:[#allocation5 + $0x3b0] sm:$0xff]
    %v243 = vld [vmem:[#allocation5 + $0x3b8] sm:$0xff]
    %v244 = vld [vmem:[#allocation5 + $0x3c0] sm:$0xff]
    %v245 = vld [vmem:[#allocation5 + $0x3c8] sm:$0xff]
    %v246 = vld [vmem:[#allocation5 + $0x3d0] sm:$0xff]
    %v247 = vld [vmem:[#allocation5 + $0x3d8] sm:$0xff]
    %v248 = vld [vmem:[#allocation5 + $0x3e0] sm:$0xff]
    %v249 = vld [vmem:[#allocation5 + $0x3e8] sm:$0xff]
    %v250 = vld [vmem:[#allocation5 + $0x3f0] sm:$0xff]
    %v251 = vld [vmem:[#allocation5 + $0x3f8] sm:$0xff]
    %v252 = vld [vmem:[#allocation5 + $0x400] sm:$0xff]
    %v253 = vld [vmem:[#allocation5 + $0x408] sm:$0xff]
    %v254 = vld [vmem:[#allocation5 + $0x410] sm:$0xff]
    %v255 = vld [vmem:[#allocation5 + $0x418] sm:$0xff]
    %v256 = vld [vmem:[#allocation5 + $0x420] sm:$0xff]
    %v257 = vld [vmem:[#allocation5 + $0x428] sm:$0xff]
    %v258 = vld [vmem:[#allocation5 + $0x430] sm:$0xff]
    %v259 = vld [vmem:[#allocation5 + $0x438] sm:$0xff]
    %v260 = vld [vmem:[#allocation5 + $0x440] sm:$0xff]
    %v261 = vld [vmem:[#allocation5 + $0x448] sm:$0xff]
    %v262 = vld [vmem:[#allocation5 + $0x450] sm:$0xff]
    %v263 = vld [vmem:[#allocation5 + $0x458] sm:$0xff]
    %v264 = vld [vmem:[#allocation5 + $0x460] sm:$0xff]
    %v265 = vld [vmem:[#allocation5 + $0x468] sm:$0xff]
    %v266 = vld [vmem:[#allocation5 + $0x470] sm:$0xff]
    %v267 = vld [vmem:[#allocation5 + $0x478] sm:$0xff]
    %v268 = vld [vmem:[#allocation5 + $0x480] sm:$0xff]
    %v269 = vld [vmem:[#allocation5 + $0x488] sm:$0xff]
    %v270 = vld [vmem:[#allocation5 + $0x490] sm:$0xff]
    %v271 = vld [vmem:[#allocation5 + $0x498] sm:$0xff]
    %v272 = vld [vmem:[#allocation5 + $0x4a0] sm:$0xff]
    %v273 = vld [vmem:[#allocation5 + $0x4a8] sm:$0xff]
    %v274 = vld [vmem:[#allocation5 + $0x4b0] sm:$0xff]
    %v275 = vld [vmem:[#allocation5 + $0x4b8] sm:$0xff]
    %v276 = vld [vmem:[#allocation5 + $0x4c0] sm:$0xff]
    %v277 = vld [vmem:[#allocation5 + $0x4c8] sm:$0xff]
    %v278 = vld [vmem:[#allocation5 + $0x4d0] sm:$0xff]
    %v279 = vld [vmem:[#allocation5 + $0x4d8] sm:$0xff]
    %v280 = vld [vmem:[#allocation5 + $0x4e0] sm:$0xff]
    %v281 = vld [vmem:[#allocation5 + $0x4e8] sm:$0xff]
    %v282 = vld [vmem:[#allocation5 + $0x4f0] sm:$0xff]
    %v283 = vld [vmem:[#allocation5 + $0x4f8] sm:$0xff]
    %v284 = vld [vmem:[#allocation5 + $0x500] sm:$0xff]
    %v285 = vld [vmem:[#allocation5 + $0x508] sm:$0xff]
    %v286 = vld [vmem:[#allocation5 + $0x510] sm:$0xff]
    %v287 = vld [vmem:[#allocation5 + $0x518] sm:$0xff]
    %v288 = vld [vmem:[#allocation5 + $0x520] sm:$0xff]
    %v289 = vld [vmem:[#allocation5 + $0x528] sm:$0xff]
    %v290 = vld [vmem:[#allocation5 + $0x530] sm:$0xff]
    %v291 = vld [vmem:[#allocation5 + $0x538] sm:$0xff]
    %v292 = vld [vmem:[#allocation5 + $0x540] sm:$0xff]
    %v293 = vld [vmem:[#allocation5 + $0x548] sm:$0xff]
    %v294 = vld [vmem:[#allocation5 + $0x550] sm:$0xff]
    %v295 = vld [vmem:[#allocation5 + $0x558] sm:$0xff]
    %v296 = vld [vmem:[#allocation5 + $0x560] sm:$0xff]
    %v297 = vld [vmem:[#allocation5 + $0x568] sm:$0xff]
    %v298 = vld [vmem:[#allocation5 + $0x570] sm:$0xff]
    %v299 = vld [vmem:[#allocation5 + $0x578] sm:$0xff]
    %v300 = vld [vmem:[#allocation5 + $0x580] sm:$0xff]
    %v301 = vld [vmem:[#allocation5 + $0x588] sm:$0xff]
    %v302 = vld [vmem:[#allocation5 + $0x590] sm:$0xff]
    %v303 = vld [vmem:[#allocation5 + $0x598] sm:$0xff]
    %v304 = vld [vmem:[#allocation5 + $0x5a0] sm:$0xff]
    %v305 = vld [vmem:[#allocation5 + $0x5a8] sm:$0xff]
    %v306 = vld [vmem:[#allocation5 + $0x5b0] sm:$0xff]
    %v307 = vld [vmem:[#allocation5 + $0x5b8] sm:$0xff]
    %v308 = vld [vmem:[#allocation5 + $0x5c0] sm:$0xff]
    %v309 = vld [vmem:[#allocation5 + $0x5c8] sm:$0xff]
    %v310 = vld [vmem:[#allocation5 + $0x5d0] sm:$0xff]
    %v311 = vld [vmem:[#allocation5 + $0x5d8] sm:$0xff]
    %v312 = vld [vmem:[#allocation5 + $0x5e0] sm:$0xff]
    %v313 = vld [vmem:[#allocation5 + $0x5e8] sm:$0xff]
    %v314 = vld [vmem:[#allocation5 + $0x5f0] sm:$0xff]
    %v315 = vld [vmem:[#allocation5 + $0x5f8] sm:$0xff]
    %v316 = vld [vmem:[#allocation5 + $0x600] sm:$0xff]
    %v317 = vld [vmem:[#allocation5 + $0x608] sm:$0xff]
    %v318 = vld [vmem:[#allocation5 + $0x610] sm:$0xff]
    %v319 = vld [vmem:[#allocation5 + $0x618] sm:$0xff]
    %v320 = vld [vmem:[#allocation5 + $0x620] sm:$0xff]
    %v321 = vld [vmem:[#allocation5 + $0x628] sm:$0xff]
    %v322 = vld [vmem:[#allocation5 + $0x630] sm:$0xff]
    %v323 = vld [vmem:[#allocation5 + $0x638] sm:$0xff]
    %v324 = vld [vmem:[#allocation5 + $0x640] sm:$0xff]
    %v325 = vld [vmem:[#allocation5 + $0x648] sm:$0xff]
    %v326 = vld [vmem:[#allocation5 + $0x650] sm:$0xff]
    %v327 = vld [vmem:[#allocation5 + $0x658] sm:$0xff]
    %v328 = vld [vmem:[#allocation5 + $0x660] sm:$0xff]
    %v329 = vld [vmem:[#allocation5 + $0x668] sm:$0xff]
    %v330 = vld [vmem:[#allocation5 + $0x670] sm:$0xff]
    %v331 = vld [vmem:[#allocation5 + $0x678] sm:$0xff]
    %v332 = vld [vmem:[#allocation5 + $0x680] sm:$0xff]
    %v333 = vld [vmem:[#allocation5 + $0x688] sm:$0xff]
    %v334 = vld [vmem:[#allocation5 + $0x690] sm:$0xff]
    %v335 = vld [vmem:[#allocation5 + $0x698] sm:$0xff]
    %v336 = vld [vmem:[#allocation5 + $0x6a0] sm:$0xff]
    %v337 = vld [vmem:[#allocation5 + $0x6a8] sm:$0xff]
    %v338 = vld [vmem:[#allocation5 + $0x6b0] sm:$0xff]
    %v339 = vld [vmem:[#allocation5 + $0x6b8] sm:$0xff]
    %v340 = vld [vmem:[#allocation5 + $0x6c0] sm:$0xff]
    %v341 = vld [vmem:[#allocation5 + $0x6c8] sm:$0xff]
    %v342 = vld [vmem:[#allocation5 + $0x6d0] sm:$0xff]
    %v343 = vld [vmem:[#allocation5 + $0x6d8] sm:$0xff]
    %v344 = vld [vmem:[#allocation5 + $0x6e0] sm:$0xff]
    %v345 = vld [vmem:[#allocation5 + $0x6e8] sm:$0xff]
    %v346 = vld [vmem:[#allocation5 + $0x6f0] sm:$0xff]
    %v347 = vld [vmem:[#allocation5 + $0x6f8] sm:$0xff]
    %v348 = vld [vmem:[%s2] sm:$0xf]
    %v350 = vlaneseq
    %v351 = vshrl.u32 %v350, 7
    %v352 = vsub.s32 0, %v351
    %v353 = vrot.slane %v348, %v352
    %v354 = vlaneseq
    %v355 = vshrl.u32 %v354, 7
    %v356 = vsub.s32 1, %v355
    %v357 = vrot.slane %v348, %v356
    %v358 = vlaneseq
    %v359 = vshrl.u32 %v358, 7
    %v360 = vsub.s32 2, %v359
    %v361 = vrot.slane %v348, %v360
    %v362 = vlaneseq
    %v363 = vshrl.u32 %v362, 7
    %v364 = vsub.s32 3, %v363
    %v365 = vrot.slane %v348, %v364
    %v374 = vunpack.c.l.b16 %v120
    %v375 = vunpack.c.h.b16 %v120
    %v376 = vunpack.c.l.b16 %v121
    %v377 = vunpack.c.h.b16 %v121
    %v378 = vunpack.c.l.b16 %v122
    %v379 = vunpack.c.h.b16 %v122
    %v380 = vunpack.c.l.b16 %v123
    %v381 = vpack.c.b16 %v374, %v374
    %v382 = vpack.c.b16 %v375, %v375
    %v383 = vpack.c.b16 %v376, %v376
    %v384 = vpack.c.b16 %v377, %v377
    %v385 = vpack.c.b16 %v378, %v378
    %v386 = vpack.c.b16 %v379, %v379
    %v387 = vpack.c.b16 %v380, %v380
    %v619 = vunpack.c.l.b16 %v124
    %v620 = vunpack.c.h.b16 %v124
    %v621 = vunpack.c.l.b16 %v125
    %v622 = vunpack.c.h.b16 %v125
    %v623 = vunpack.c.l.b16 %v126
    %v624 = vunpack.c.h.b16 %v126
    %v625 = vunpack.c.l.b16 %v127
    %v626 = vunpack.c.h.b16 %v127
    %v627 = vunpack.c.l.b16 %v128
    %v628 = vunpack.c.h.b16 %v128
    %v629 = vunpack.c.l.b16 %v129
    %v630 = vunpack.c.h.b16 %v129
    %v631 = vunpack.c.l.b16 %v130
    %v632 = vunpack.c.h.b16 %v130
    %v633 = vunpack.c.l.b16 %v131
    %v634 = vunpack.c.h.b16 %v131
    %v635 = vunpack.c.l.b16 %v132
    %v636 = vunpack.c.h.b16 %v132
    %v637 = vunpack.c.l.b16 %v133
    %v638 = vunpack.c.h.b16 %v133
    %v639 = vunpack.c.l.b16 %v134
    %v640 = vunpack.c.h.b16 %v134
    %v641 = vunpack.c.l.b16 %v135
    %v642 = vunpack.c.h.b16 %v135
    %v643 = vunpack.c.l.b16 %v136
    %v644 = vunpack.c.h.b16 %v136
    %v645 = vunpack.c.l.b16 %v137
    %v646 = vunpack.c.h.b16 %v137
    %v647 = vunpack.c.l.b16 %v138
    %v648 = vunpack.c.h.b16 %v138
    %v649 = vunpack.c.l.b16 %v139
    %v650 = vunpack.c.h.b16 %v139
    %v651 = vunpack.c.l.b16 %v140
    %v652 = vunpack.c.h.b16 %v140
    %v653 = vunpack.c.l.b16 %v141
    %v654 = vunpack.c.h.b16 %v141
    %v655 = vunpack.c.l.b16 %v142
    %v656 = vunpack.c.h.b16 %v142
    %v657 = vunpack.c.l.b16 %v143
    %v658 = vunpack.c.h.b16 %v143
    %v659 = vunpack.c.l.b16 %v144
    %v660 = vunpack.c.h.b16 %v144
    %v661 = vunpack.c.l.b16 %v145
    %v662 = vunpack.c.h.b16 %v145
    %v663 = vunpack.c.l.b16 %v146
    %v664 = vunpack.c.h.b16 %v146
    %v665 = vunpack.c.l.b16 %v147
    %v666 = vunpack.c.h.b16 %v147
    %v667 = vunpack.c.l.b16 %v148
    %v668 = vunpack.c.h.b16 %v148
    %v669 = vunpack.c.l.b16 %v149
    %v670 = vunpack.c.h.b16 %v149
    %v671 = vunpack.c.l.b16 %v150
    %v672 = vunpack.c.h.b16 %v150
    %v673 = vunpack.c.l.b16 %v151
    %v674 = vunpack.c.h.b16 %v151
    %v675 = vunpack.c.l.b16 %v152
    %v676 = vunpack.c.h.b16 %v152
    %v677 = vunpack.c.l.b16 %v153
    %v678 = vunpack.c.h.b16 %v153
    %v679 = vunpack.c.l.b16 %v154
    %v680 = vunpack.c.h.b16 %v154
    %v681 = vunpack.c.l.b16 %v155
    %v682 = vunpack.c.h.b16 %v155
    %v683 = vunpack.c.l.b16 %v156
    %v684 = vunpack.c.h.b16 %v156
    %v685 = vunpack.c.l.b16 %v157
    %v686 = vunpack.c.h.b16 %v157
    %v687 = vunpack.c.l.b16 %v158
    %v688 = vunpack.c.h.b16 %v158
    %v689 = vunpack.c.l.b16 %v159
    %v690 = vunpack.c.h.b16 %v159
    %v691 = vunpack.c.l.b16 %v160
    %v692 = vunpack.c.h.b16 %v160
    %v693 = vunpack.c.l.b16 %v161
    %v694 = vunpack.c.h.b16 %v161
    %v695 = vunpack.c.l.b16 %v162
    %v696 = vunpack.c.h.b16 %v162
    %v697 = vunpack.c.l.b16 %v163
    %v698 = vunpack.c.h.b16 %v163
    %v699 = vunpack.c.l.b16 %v164
    %v700 = vunpack.c.h.b16 %v164
    %v701 = vunpack.c.l.b16 %v165
    %v702 = vunpack.c.h.b16 %v165
    %v703 = vunpack.c.l.b16 %v166
    %v704 = vunpack.c.h.b16 %v166
    %v705 = vunpack.c.l.b16 %v167
    %v706 = vunpack.c.h.b16 %v167
    %v707 = vunpack.c.l.b16 %v168
    %v708 = vunpack.c.h.b16 %v168
    %v709 = vunpack.c.l.b16 %v169
    %v710 = vunpack.c.h.b16 %v169
    %v711 = vunpack.c.l.b16 %v170
    %v712 = vunpack.c.h.b16 %v170
    %v713 = vunpack.c.l.b16 %v171
    %v714 = vunpack.c.h.b16 %v171
    %v715 = vunpack.c.l.b16 %v172
    %v716 = vunpack.c.h.b16 %v172
    %v717 = vunpack.c.l.b16 %v173
    %v718 = vunpack.c.h.b16 %v173
    %v719 = vunpack.c.l.b16 %v174
    %v720 = vunpack.c.h.b16 %v174
    %v721 = vunpack.c.l.b16 %v175
    %v722 = vunpack.c.h.b16 %v175
    %v723 = vunpack.c.l.b16 %v176
    %v724 = vunpack.c.h.b16 %v176
    %v725 = vunpack.c.l.b16 %v177
    %v726 = vunpack.c.h.b16 %v177
    %v727 = vunpack.c.l.b16 %v178
    %v728 = vunpack.c.h.b16 %v178
    %v729 = vunpack.c.l.b16 %v179
    %v730 = vunpack.c.h.b16 %v179
    %v731 = vunpack.c.l.b16 %v180
    %v732 = vunpack.c.h.b16 %v180
    %v733 = vunpack.c.l.b16 %v181
    %v734 = vunpack.c.h.b16 %v181
    %v735 = vunpack.c.l.b16 %v182
    %v736 = vunpack.c.h.b16 %v182
    %v737 = vunpack.c.l.b16 %v183
    %v738 = vunpack.c.h.b16 %v183
    %v739 = vunpack.c.l.b16 %v184
    %v740 = vunpack.c.h.b16 %v184
    %v741 = vunpack.c.l.b16 %v185
    %v742 = vunpack.c.h.b16 %v185
    %v743 = vunpack.c.l.b16 %v186
    %v744 = vunpack.c.h.b16 %v186
    %v745 = vunpack.c.l.b16 %v187
    %v746 = vunpack.c.h.b16 %v187
    %v747 = vunpack.c.l.b16 %v188
    %v748 = vunpack.c.h.b16 %v188
    %v749 = vunpack.c.l.b16 %v189
    %v750 = vunpack.c.h.b16 %v189
    %v751 = vunpack.c.l.b16 %v190
    %v752 = vunpack.c.h.b16 %v190
    %v753 = vunpack.c.l.b16 %v191
    %v754 = vunpack.c.h.b16 %v191
    %v755 = vunpack.c.l.b16 %v192
    %v756 = vunpack.c.h.b16 %v192
    %v757 = vunpack.c.l.b16 %v193
    %v758 = vunpack.c.h.b16 %v193
    %v759 = vunpack.c.l.b16 %v194
    %v760 = vunpack.c.h.b16 %v194
    %v761 = vunpack.c.l.b16 %v195
    %v762 = vunpack.c.h.b16 %v195
    %v763 = vunpack.c.l.b16 %v196
    %v764 = vunpack.c.h.b16 %v196
    %v765 = vunpack.c.l.b16 %v197
    %v766 = vunpack.c.h.b16 %v197
    %v767 = vunpack.c.l.b16 %v198
    %v768 = vunpack.c.h.b16 %v198
    %v769 = vunpack.c.l.b16 %v199
    %v770 = vunpack.c.h.b16 %v199
    %v771 = vunpack.c.l.b16 %v200
    %v772 = vunpack.c.h.b16 %v200
    %v773 = vunpack.c.l.b16 %v201
    %v774 = vunpack.c.h.b16 %v201
    %v775 = vunpack.c.l.b16 %v202
    %v776 = vunpack.c.h.b16 %v202
    %v777 = vunpack.c.l.b16 %v203
    %v778 = vunpack.c.h.b16 %v203
    %v779 = vunpack.c.l.b16 %v204
    %v780 = vunpack.c.h.b16 %v204
    %v781 = vunpack.c.l.b16 %v205
    %v782 = vunpack.c.h.b16 %v205
    %v783 = vunpack.c.l.b16 %v206
    %v784 = vunpack.c.h.b16 %v206
    %v785 = vunpack.c.l.b16 %v207
    %v786 = vunpack.c.h.b16 %v207
    %v787 = vunpack.c.l.b16 %v208
    %v788 = vunpack.c.h.b16 %v208
    %v789 = vunpack.c.l.b16 %v209
    %v790 = vunpack.c.h.b16 %v209
    %v791 = vunpack.c.l.b16 %v210
    %v792 = vunpack.c.h.b16 %v210
    %v793 = vunpack.c.l.b16 %v211
    %v794 = vunpack.c.h.b16 %v211
    %v795 = vunpack.c.l.b16 %v212
    %v796 = vunpack.c.h.b16 %v212
    %v797 = vunpack.c.l.b16 %v213
    %v798 = vunpack.c.h.b16 %v213
    %v799 = vunpack.c.l.b16 %v214
    %v800 = vunpack.c.h.b16 %v214
    %v801 = vunpack.c.l.b16 %v215
    %v802 = vunpack.c.h.b16 %v215
    %v803 = vunpack.c.l.b16 %v216
    %v804 = vunpack.c.h.b16 %v216
    %v805 = vunpack.c.l.b16 %v217
    %v806 = vunpack.c.h.b16 %v217
    %v807 = vunpack.c.l.b16 %v218
    %v808 = vunpack.c.h.b16 %v218
    %v809 = vunpack.c.l.b16 %v219
    %v810 = vunpack.c.h.b16 %v219
    %v811 = vunpack.c.l.b16 %v220
    %v812 = vunpack.c.h.b16 %v220
    %v813 = vunpack.c.l.b16 %v221
    %v814 = vunpack.c.h.b16 %v221
    %v815 = vunpack.c.l.b16 %v222
    %v816 = vunpack.c.h.b16 %v222
    %v817 = vunpack.c.l.b16 %v223
    %v818 = vunpack.c.h.b16 %v223
    %v819 = vunpack.c.l.b16 %v224
    %v820 = vunpack.c.h.b16 %v224
    %v821 = vunpack.c.l.b16 %v225
    %v822 = vunpack.c.h.b16 %v225
    %v823 = vunpack.c.l.b16 %v226
    %v824 = vunpack.c.h.b16 %v226
    %v825 = vunpack.c.l.b16 %v227
    %v826 = vunpack.c.h.b16 %v227
    %v827 = vunpack.c.l.b16 %v228
    %v828 = vunpack.c.h.b16 %v228
    %v829 = vunpack.c.l.b16 %v229
    %v830 = vunpack.c.h.b16 %v229
    %v831 = vunpack.c.l.b16 %v230
    %v832 = vunpack.c.h.b16 %v230
    %v833 = vunpack.c.l.b16 %v231
    %v834 = vunpack.c.h.b16 %v231
    %v835 = vunpack.c.l.b16 %v232
    %v836 = vunpack.c.h.b16 %v232
    %v837 = vunpack.c.l.b16 %v233
    %v838 = vunpack.c.h.b16 %v233
    %v839 = vunpack.c.l.b16 %v234
    %v840 = vunpack.c.h.b16 %v234
    %v841 = vunpack.c.l.b16 %v235
    %v842 = vunpack.c.h.b16 %v235
    %v843 = vunpack.c.l.b16 %v236
    %v844 = vunpack.c.h.b16 %v236
    %v845 = vunpack.c.l.b16 %v237
    %v846 = vunpack.c.h.b16 %v237
    %v847 = vunpack.c.l.b16 %v238
    %v848 = vunpack.c.h.b16 %v238
    %v849 = vunpack.c.l.b16 %v239
    %v850 = vunpack.c.h.b16 %v239
    %v851 = vunpack.c.l.b16 %v240
    %v852 = vunpack.c.h.b16 %v240
    %v853 = vunpack.c.l.b16 %v241
    %v854 = vunpack.c.h.b16 %v241
    %v855 = vunpack.c.l.b16 %v242
    %v856 = vunpack.c.h.b16 %v242
    %v857 = vunpack.c.l.b16 %v243
    %v858 = vunpack.c.h.b16 %v243
    %v859 = vunpack.c.l.b16 %v244
    %v860 = vunpack.c.h.b16 %v244
    %v861 = vunpack.c.l.b16 %v245
    %v862 = vunpack.c.h.b16 %v245
    %v863 = vunpack.c.l.b16 %v246
    %v864 = vunpack.c.h.b16 %v246
    %v865 = vunpack.c.l.b16 %v247
    %v866 = vunpack.c.h.b16 %v247
    %v867 = vunpack.c.l.b16 %v248
    %v868 = vunpack.c.h.b16 %v248
    %v869 = vunpack.c.l.b16 %v249
    %v870 = vunpack.c.h.b16 %v249
    %v871 = vunpack.c.l.b16 %v250
    %v872 = vunpack.c.h.b16 %v250
    %v873 = vunpack.c.l.b16 %v251
    %v874 = vunpack.c.h.b16 %v251
    %v875 = vunpack.c.l.b16 %v252
    %v876 = vunpack.c.h.b16 %v252
    %v877 = vunpack.c.l.b16 %v253
    %v878 = vunpack.c.h.b16 %v253
    %v879 = vunpack.c.l.b16 %v254
    %v880 = vunpack.c.h.b16 %v254
    %v881 = vunpack.c.l.b16 %v255
    %v882 = vunpack.c.h.b16 %v255
    %v883 = vunpack.c.l.b16 %v256
    %v884 = vunpack.c.h.b16 %v256
    %v885 = vunpack.c.l.b16 %v257
    %v886 = vunpack.c.h.b16 %v257
    %v887 = vunpack.c.l.b16 %v258
    %v888 = vunpack.c.h.b16 %v258
    %v889 = vunpack.c.l.b16 %v259
    %v890 = vunpack.c.h.b16 %v259
    %v891 = vunpack.c.l.b16 %v260
    %v892 = vunpack.c.h.b16 %v260
    %v893 = vunpack.c.l.b16 %v261
    %v894 = vunpack.c.h.b16 %v261
    %v895 = vunpack.c.l.b16 %v262
    %v896 = vunpack.c.h.b16 %v262
    %v897 = vunpack.c.l.b16 %v263
    %v898 = vunpack.c.h.b16 %v263
    %v899 = vunpack.c.l.b16 %v264
    %v900 = vunpack.c.h.b16 %v264
    %v901 = vunpack.c.l.b16 %v265
    %v902 = vunpack.c.h.b16 %v265
    %v903 = vunpack.c.l.b16 %v266
    %v904 = vunpack.c.h.b16 %v266
    %v905 = vunpack.c.l.b16 %v267
    %v906 = vunpack.c.h.b16 %v267
    %v907 = vunpack.c.l.b16 %v268
    %v908 = vunpack.c.h.b16 %v268
    %v909 = vunpack.c.l.b16 %v269
    %v910 = vunpack.c.h.b16 %v269
    %v911 = vunpack.c.l.b16 %v270
    %v912 = vunpack.c.h.b16 %v270
    %v913 = vunpack.c.l.b16 %v271
    %v914 = vunpack.c.h.b16 %v271
    %v915 = vunpack.c.l.b16 %v272
    %v916 = vunpack.c.h.b16 %v272
    %v917 = vunpack.c.l.b16 %v273
    %v918 = vunpack.c.h.b16 %v273
    %v919 = vunpack.c.l.b16 %v274
    %v920 = vunpack.c.h.b16 %v274
    %v921 = vunpack.c.l.b16 %v275
    %v922 = vunpack.c.h.b16 %v275
    %v923 = vunpack.c.l.b16 %v276
    %v924 = vunpack.c.h.b16 %v276
    %v925 = vunpack.c.l.b16 %v277
    %v926 = vunpack.c.h.b16 %v277
    %v927 = vunpack.c.l.b16 %v278
    %v928 = vunpack.c.h.b16 %v278
    %v929 = vunpack.c.l.b16 %v279
    %v930 = vunpack.c.h.b16 %v279
    %v931 = vunpack.c.l.b16 %v280
    %v932 = vunpack.c.h.b16 %v280
    %v933 = vunpack.c.l.b16 %v281
    %v934 = vunpack.c.h.b16 %v281
    %v935 = vunpack.c.l.b16 %v282
    %v936 = vunpack.c.h.b16 %v282
    %v937 = vunpack.c.l.b16 %v283
    %v938 = vunpack.c.h.b16 %v283
    %v939 = vunpack.c.l.b16 %v284
    %v940 = vunpack.c.h.b16 %v284
    %v941 = vunpack.c.l.b16 %v285
    %v942 = vunpack.c.h.b16 %v285
    %v943 = vunpack.c.l.b16 %v286
    %v944 = vunpack.c.h.b16 %v286
    %v945 = vunpack.c.l.b16 %v287
    %v946 = vunpack.c.h.b16 %v287
    %v947 = vunpack.c.l.b16 %v288
    %v948 = vunpack.c.h.b16 %v288
    %v949 = vunpack.c.l.b16 %v289
    %v950 = vunpack.c.h.b16 %v289
    %v951 = vunpack.c.l.b16 %v290
    %v952 = vunpack.c.h.b16 %v290
    %v953 = vunpack.c.l.b16 %v291
    %v954 = vunpack.c.h.b16 %v291
    %v955 = vunpack.c.l.b16 %v292
    %v956 = vunpack.c.h.b16 %v292
    %v957 = vunpack.c.l.b16 %v293
    %v958 = vunpack.c.h.b16 %v293
    %v959 = vunpack.c.l.b16 %v294
    %v960 = vunpack.c.h.b16 %v294
    %v961 = vunpack.c.l.b16 %v295
    %v962 = vunpack.c.h.b16 %v295
    %v963 = vunpack.c.l.b16 %v296
    %v964 = vunpack.c.h.b16 %v296
    %v965 = vunpack.c.l.b16 %v297
    %v966 = vunpack.c.h.b16 %v297
    %v967 = vunpack.c.l.b16 %v298
    %v968 = vunpack.c.h.b16 %v298
    %v969 = vunpack.c.l.b16 %v299
    %v970 = vunpack.c.h.b16 %v299
    %v971 = vunpack.c.l.b16 %v300
    %v972 = vunpack.c.h.b16 %v300
    %v973 = vunpack.c.l.b16 %v301
    %v974 = vunpack.c.h.b16 %v301
    %v975 = vunpack.c.l.b16 %v302
    %v976 = vunpack.c.h.b16 %v302
    %v977 = vunpack.c.l.b16 %v303
    %v978 = vunpack.c.h.b16 %v303
    %v979 = vunpack.c.l.b16 %v304
    %v980 = vunpack.c.h.b16 %v304
    %v981 = vunpack.c.l.b16 %v305
    %v982 = vunpack.c.h.b16 %v305
    %v983 = vunpack.c.l.b16 %v306
    %v984 = vunpack.c.h.b16 %v306
    %v985 = vunpack.c.l.b16 %v307
    %v986 = vunpack.c.h.b16 %v307
    %v987 = vunpack.c.l.b16 %v308
    %v988 = vunpack.c.h.b16 %v308
    %v989 = vunpack.c.l.b16 %v309
    %v990 = vunpack.c.h.b16 %v309
    %v991 = vunpack.c.l.b16 %v310
    %v992 = vunpack.c.h.b16 %v310
    %v993 = vunpack.c.l.b16 %v311
    %v994 = vunpack.c.h.b16 %v311
    %v995 = vunpack.c.l.b16 %v312
    %v996 = vunpack.c.h.b16 %v312
    %v997 = vunpack.c.l.b16 %v313
    %v998 = vunpack.c.h.b16 %v313
    %v999 = vunpack.c.l.b16 %v314
    %v1000 = vunpack.c.h.b16 %v314
    %v1001 = vunpack.c.l.b16 %v315
    %v1002 = vunpack.c.h.b16 %v315
    %v1003 = vunpack.c.l.b16 %v316
    %v1004 = vunpack.c.h.b16 %v316
    %v1005 = vunpack.c.l.b16 %v317
    %v1006 = vunpack.c.h.b16 %v317
    %v1007 = vunpack.c.l.b16 %v318
    %v1008 = vunpack.c.h.b16 %v318
    %v1009 = vunpack.c.l.b16 %v319
    %v1010 = vunpack.c.h.b16 %v319
    %v1011 = vunpack.c.l.b16 %v320
    %v1012 = vunpack.c.h.b16 %v320
    %v1013 = vunpack.c.l.b16 %v321
    %v1014 = vunpack.c.h.b16 %v321
    %v1015 = vunpack.c.l.b16 %v322
    %v1016 = vunpack.c.h.b16 %v322
    %v1017 = vunpack.c.l.b16 %v323
    %v1018 = vunpack.c.h.b16 %v323
    %v1019 = vunpack.c.l.b16 %v324
    %v1020 = vunpack.c.h.b16 %v324
    %v1021 = vunpack.c.l.b16 %v325
    %v1022 = vunpack.c.h.b16 %v325
    %v1023 = vunpack.c.l.b16 %v326
    %v1024 = vunpack.c.h.b16 %v326
    %v1025 = vunpack.c.l.b16 %v327
    %v1026 = vunpack.c.h.b16 %v327
    %v1027 = vunpack.c.l.b16 %v328
    %v1028 = vunpack.c.h.b16 %v328
    %v1029 = vunpack.c.l.b16 %v329
    %v1030 = vunpack.c.h.b16 %v329
    %v1031 = vunpack.c.l.b16 %v330
    %v1032 = vunpack.c.h.b16 %v330
    %v1033 = vunpack.c.l.b16 %v331
    %v1034 = vunpack.c.h.b16 %v331
    %v1035 = vunpack.c.l.b16 %v332
    %v1036 = vunpack.c.h.b16 %v332
    %v1037 = vunpack.c.l.b16 %v333
    %v1038 = vunpack.c.h.b16 %v333
    %v1039 = vunpack.c.l.b16 %v334
    %v1040 = vunpack.c.h.b16 %v334
    %v1041 = vunpack.c.l.b16 %v335
    %v1042 = vunpack.c.h.b16 %v335
    %v1043 = vunpack.c.l.b16 %v336
    %v1044 = vunpack.c.h.b16 %v336
    %v1045 = vunpack.c.l.b16 %v337
    %v1046 = vunpack.c.h.b16 %v337
    %v1047 = vunpack.c.l.b16 %v338
    %v1048 = vunpack.c.h.b16 %v338
    %v1049 = vunpack.c.l.b16 %v339
    %v1050 = vunpack.c.h.b16 %v339
    %v1051 = vunpack.c.l.b16 %v340
    %v1052 = vunpack.c.h.b16 %v340
    %v1053 = vunpack.c.l.b16 %v341
    %v1054 = vunpack.c.h.b16 %v341
    %v1055 = vunpack.c.l.b16 %v342
    %v1056 = vunpack.c.h.b16 %v342
    %v1057 = vunpack.c.l.b16 %v343
    %v1058 = vunpack.c.h.b16 %v343
    %v1059 = vunpack.c.l.b16 %v344
    %v1060 = vunpack.c.h.b16 %v344
    %v1061 = vunpack.c.l.b16 %v345
    %v1062 = vunpack.c.h.b16 %v345
    %v1063 = vunpack.c.l.b16 %v346
    %v1064 = vunpack.c.h.b16 %v346
    %v1065 = vunpack.c.l.b16 %v347
    %v1066 = vunpack.c.h.b16 %v347
    %v1067 = vpack.c.b16 %v623, %v619
    %v1068 = vpack.c.b16 %v624, %v620
    %v1069 = vpack.c.b16 %v625, %v621
    %v1070 = vpack.c.b16 %v626, %v622
    %v1071 = vpack.c.b16 %v631, %v627
    %v1072 = vpack.c.b16 %v632, %v628
    %v1073 = vpack.c.b16 %v633, %v629
    %v1074 = vpack.c.b16 %v634, %v630
    %v1075 = vpack.c.b16 %v639, %v635
    %v1076 = vpack.c.b16 %v640, %v636
    %v1077 = vpack.c.b16 %v641, %v637
    %v1078 = vpack.c.b16 %v642, %v638
    %v1079 = vpack.c.b16 %v647, %v643
    %v1080 = vpack.c.b16 %v648, %v644
    %v1081 = vpack.c.b16 %v649, %v645
    %v1082 = vpack.c.b16 %v650, %v646
    %v1083 = vpack.c.b16 %v655, %v651
    %v1084 = vpack.c.b16 %v656, %v652
    %v1085 = vpack.c.b16 %v657, %v653
    %v1086 = vpack.c.b16 %v658, %v654
    %v1087 = vpack.c.b16 %v663, %v659
    %v1088 = vpack.c.b16 %v664, %v660
    %v1089 = vpack.c.b16 %v665, %v661
    %v1090 = vpack.c.b16 %v666, %v662
    %v1091 = vpack.c.b16 %v671, %v667
    %v1092 = vpack.c.b16 %v672, %v668
    %v1093 = vpack.c.b16 %v673, %v669
    %v1094 = vpack.c.b16 %v674, %v670
    %v1095 = vpack.c.b16 %v679, %v675
    %v1096 = vpack.c.b16 %v680, %v676
    %v1097 = vpack.c.b16 %v681, %v677
    %v1098 = vpack.c.b16 %v682, %v678
    %v1099 = vpack.c.b16 %v687, %v683
    %v1100 = vpack.c.b16 %v688, %v684
    %v1101 = vpack.c.b16 %v689, %v685
    %v1102 = vpack.c.b16 %v690, %v686
    %v1103 = vpack.c.b16 %v695, %v691
    %v1104 = vpack.c.b16 %v696, %v692
    %v1105 = vpack.c.b16 %v697, %v693
    %v1106 = vpack.c.b16 %v698, %v694
    %v1107 = vpack.c.b16 %v703, %v699
    %v1108 = vpack.c.b16 %v704, %v700
    %v1109 = vpack.c.b16 %v705, %v701
    %v1110 = vpack.c.b16 %v706, %v702
    %v1111 = vpack.c.b16 %v711, %v707
    %v1112 = vpack.c.b16 %v712, %v708
    %v1113 = vpack.c.b16 %v713, %v709
    %v1114 = vpack.c.b16 %v714, %v710
    %v1115 = vpack.c.b16 %v719, %v715
    %v1116 = vpack.c.b16 %v720, %v716
    %v1117 = vpack.c.b16 %v721, %v717
    %v1118 = vpack.c.b16 %v722, %v718
    %v1119 = vpack.c.b16 %v727, %v723
    %v1120 = vpack.c.b16 %v728, %v724
    %v1121 = vpack.c.b16 %v729, %v725
    %v1122 = vpack.c.b16 %v730, %v726
    %v1123 = vpack.c.b16 %v735, %v731
    %v1124 = vpack.c.b16 %v736, %v732
    %v1125 = vpack.c.b16 %v737, %v733
    %v1126 = vpack.c.b16 %v738, %v734
    %v1127 = vpack.c.b16 %v743, %v739
    %v1128 = vpack.c.b16 %v744, %v740
    %v1129 = vpack.c.b16 %v745, %v741
    %v1130 = vpack.c.b16 %v746, %v742
    %v1131 = vpack.c.b16 %v751, %v747
    %v1132 = vpack.c.b16 %v752, %v748
    %v1133 = vpack.c.b16 %v753, %v749
    %v1134 = vpack.c.b16 %v754, %v750
    %v1135 = vpack.c.b16 %v759, %v755
    %v1136 = vpack.c.b16 %v760, %v756
    %v1137 = vpack.c.b16 %v761, %v757
    %v1138 = vpack.c.b16 %v762, %v758
    %v1139 = vpack.c.b16 %v767, %v763
    %v1140 = vpack.c.b16 %v768, %v764
    %v1141 = vpack.c.b16 %v769, %v765
    %v1142 = vpack.c.b16 %v770, %v766
    %v1143 = vpack.c.b16 %v775, %v771
    %v1144 = vpack.c.b16 %v776, %v772
    %v1145 = vpack.c.b16 %v777, %v773
    %v1146 = vpack.c.b16 %v778, %v774
    %v1147 = vpack.c.b16 %v783, %v779
    %v1148 = vpack.c.b16 %v784, %v780
    %v1149 = vpack.c.b16 %v785, %v781
    %v1150 = vpack.c.b16 %v786, %v782
    %v1151 = vpack.c.b16 %v791, %v787
    %v1152 = vpack.c.b16 %v792, %v788
    %v1153 = vpack.c.b16 %v793, %v789
    %v1154 = vpack.c.b16 %v794, %v790
    %v1155 = vpack.c.b16 %v799, %v795
    %v1156 = vpack.c.b16 %v800, %v796
    %v1157 = vpack.c.b16 %v801, %v797
    %v1158 = vpack.c.b16 %v802, %v798
    %v1159 = vpack.c.b16 %v807, %v803
    %v1160 = vpack.c.b16 %v808, %v804
    %v1161 = vpack.c.b16 %v809, %v805
    %v1162 = vpack.c.b16 %v810, %v806
    %v1163 = vpack.c.b16 %v815, %v811
    %v1164 = vpack.c.b16 %v816, %v812
    %v1165 = vpack.c.b16 %v817, %v813
    %v1166 = vpack.c.b16 %v818, %v814
    %v1167 = vpack.c.b16 %v823, %v819
    %v1168 = vpack.c.b16 %v824, %v820
    %v1169 = vpack.c.b16 %v825, %v821
    %v1170 = vpack.c.b16 %v826, %v822
    %v1171 = vpack.c.b16 %v831, %v827
    %v1172 = vpack.c.b16 %v832, %v828
    %v1173 = vpack.c.b16 %v833, %v829
    %v1174 = vpack.c.b16 %v834, %v830
    %v1175 = vpack.c.b16 %v839, %v835
    %v1176 = vpack.c.b16 %v840, %v836
    %v1177 = vpack.c.b16 %v841, %v837
    %v1178 = vpack.c.b16 %v842, %v838
    %v1179 = vpack.c.b16 %v847, %v843
    %v1180 = vpack.c.b16 %v848, %v844
    %v1181 = vpack.c.b16 %v849, %v845
    %v1182 = vpack.c.b16 %v850, %v846
    %v1183 = vpack.c.b16 %v855, %v851
    %v1184 = vpack.c.b16 %v856, %v852
    %v1185 = vpack.c.b16 %v857, %v853
    %v1186 = vpack.c.b16 %v858, %v854
    %v1187 = vpack.c.b16 %v863, %v859
    %v1188 = vpack.c.b16 %v864, %v860
    %v1189 = vpack.c.b16 %v865, %v861
    %v1190 = vpack.c.b16 %v866, %v862
    %v1191 = vpack.c.b16 %v871, %v867
    %v1192 = vpack.c.b16 %v872, %v868
    %v1193 = vpack.c.b16 %v873, %v869
    %v1194 = vpack.c.b16 %v874, %v870
    %v1195 = vpack.c.b16 %v879, %v875
    %v1196 = vpack.c.b16 %v880, %v876
    %v1197 = vpack.c.b16 %v881, %v877
    %v1198 = vpack.c.b16 %v882, %v878
    %v1199 = vpack.c.b16 %v887, %v883
    %v1200 = vpack.c.b16 %v888, %v884
    %v1201 = vpack.c.b16 %v889, %v885
    %v1202 = vpack.c.b16 %v890, %v886
    %v1203 = vpack.c.b16 %v895, %v891
    %v1204 = vpack.c.b16 %v896, %v892
    %v1205 = vpack.c.b16 %v897, %v893
    %v1206 = vpack.c.b16 %v898, %v894
    %v1207 = vpack.c.b16 %v903, %v899
    %v1208 = vpack.c.b16 %v904, %v900
    %v1209 = vpack.c.b16 %v905, %v901
    %v1210 = vpack.c.b16 %v906, %v902
    %v1211 = vpack.c.b16 %v911, %v907
    %v1212 = vpack.c.b16 %v912, %v908
    %v1213 = vpack.c.b16 %v913, %v909
    %v1214 = vpack.c.b16 %v914, %v910
    %v1215 = vpack.c.b16 %v919, %v915
    %v1216 = vpack.c.b16 %v920, %v916
    %v1217 = vpack.c.b16 %v921, %v917
    %v1218 = vpack.c.b16 %v922, %v918
    %v1219 = vpack.c.b16 %v927, %v923
    %v1220 = vpack.c.b16 %v928, %v924
    %v1221 = vpack.c.b16 %v929, %v925
    %v1222 = vpack.c.b16 %v930, %v926
    %v1223 = vpack.c.b16 %v935, %v931
    %v1224 = vpack.c.b16 %v936, %v932
    %v1225 = vpack.c.b16 %v937, %v933
    %v1226 = vpack.c.b16 %v938, %v934
    %v1227 = vpack.c.b16 %v943, %v939
    %v1228 = vpack.c.b16 %v944, %v940
    %v1229 = vpack.c.b16 %v945, %v941
    %v1230 = vpack.c.b16 %v946, %v942
    %v1231 = vpack.c.b16 %v951, %v947
    %v1232 = vpack.c.b16 %v952, %v948
    %v1233 = vpack.c.b16 %v953, %v949
    %v1234 = vpack.c.b16 %v954, %v950
    %v1235 = vpack.c.b16 %v959, %v955
    %v1236 = vpack.c.b16 %v960, %v956
    %v1237 = vpack.c.b16 %v961, %v957
    %v1238 = vpack.c.b16 %v962, %v958
    %v1239 = vpack.c.b16 %v967, %v963
    %v1240 = vpack.c.b16 %v968, %v964
    %v1241 = vpack.c.b16 %v969, %v965
    %v1242 = vpack.c.b16 %v970, %v966
    %v1243 = vpack.c.b16 %v975, %v971
    %v1244 = vpack.c.b16 %v976, %v972
    %v1245 = vpack.c.b16 %v977, %v973
    %v1246 = vpack.c.b16 %v978, %v974
    %v1247 = vpack.c.b16 %v983, %v979
    %v1248 = vpack.c.b16 %v984, %v980
    %v1249 = vpack.c.b16 %v985, %v981
    %v1250 = vpack.c.b16 %v986, %v982
    %v1251 = vpack.c.b16 %v991, %v987
    %v1252 = vpack.c.b16 %v992, %v988
    %v1253 = vpack.c.b16 %v993, %v989
    %v1254 = vpack.c.b16 %v994, %v990
    %v1255 = vpack.c.b16 %v999, %v995
    %v1256 = vpack.c.b16 %v1000, %v996
    %v1257 = vpack.c.b16 %v1001, %v997
    %v1258 = vpack.c.b16 %v1002, %v998
    %v1259 = vpack.c.b16 %v1007, %v1003
    %v1260 = vpack.c.b16 %v1008, %v1004
    %v1261 = vpack.c.b16 %v1009, %v1005
    %v1262 = vpack.c.b16 %v1010, %v1006
    %v1263 = vpack.c.b16 %v1015, %v1011
    %v1264 = vpack.c.b16 %v1016, %v1012
    %v1265 = vpack.c.b16 %v1017, %v1013
    %v1266 = vpack.c.b16 %v1018, %v1014
    %v1267 = vpack.c.b16 %v1023, %v1019
    %v1268 = vpack.c.b16 %v1024, %v1020
    %v1269 = vpack.c.b16 %v1025, %v1021
    %v1270 = vpack.c.b16 %v1026, %v1022
    %v1271 = vpack.c.b16 %v1031, %v1027
    %v1272 = vpack.c.b16 %v1032, %v1028
    %v1273 = vpack.c.b16 %v1033, %v1029
    %v1274 = vpack.c.b16 %v1034, %v1030
    %v1275 = vpack.c.b16 %v1039, %v1035
    %v1276 = vpack.c.b16 %v1040, %v1036
    %v1277 = vpack.c.b16 %v1041, %v1037
    %v1278 = vpack.c.b16 %v1042, %v1038
    %v1279 = vpack.c.b16 %v1047, %v1043
    %v1280 = vpack.c.b16 %v1048, %v1044
    %v1281 = vpack.c.b16 %v1049, %v1045
    %v1282 = vpack.c.b16 %v1050, %v1046
    %v1283 = vpack.c.b16 %v1055, %v1051
    %v1284 = vpack.c.b16 %v1056, %v1052
    %v1285 = vpack.c.b16 %v1057, %v1053
    %v1286 = vpack.c.b16 %v1058, %v1054
    %v1287 = vpack.c.b16 %v1063, %v1059
    %v1288 = vpack.c.b16 %v1064, %v1060
    %v1289 = vpack.c.b16 %v1065, %v1061
    %v1290 = vpack.c.b16 %v1066, %v1062
    %1515 = vmatprep.subr.bf16.mxu0 %v1068
    %1516 = vmatpush1.bf16.msra.mxu0 %v1067
    %1517 = vmatprep.subr.bf16.mxu0 %v1072
    %1518 = vmatpush1.bf16.msra.mxu0 %v1071
    %1519 = vmatprep.subr.bf16.mxu0 %v1076
    %1520 = vmatpush1.bf16.msra.mxu0 %v1075
    %1521 = vmatprep.subr.bf16.mxu0 %v1080
    %1522 = vmatpush1.bf16.msra.mxu0 %v1079
    %1523 = vmatprep.subr.bf16.mxu0 %v1084
    %1524 = vmatpush1.bf16.msra.mxu0 %v1083
    %1525 = vmatprep.subr.bf16.mxu0 %v1088
    %1526 = vmatpush1.bf16.msra.mxu0 %v1087
    %1527 = vmatprep.subr.bf16.mxu0 %v1092
    %1528 = vmatpush1.bf16.msra.mxu0 %v1091
    %1529 = vmatprep.subr.bf16.mxu0 %v1096
    %1530 = vmatpush1.bf16.msra.mxu0 %v1095
    %1531 = vmatprep.subr.bf16.mxu0 %v1100
    %1532 = vmatpush1.bf16.msra.mxu0 %v1099
    %1533 = vmatprep.subr.bf16.mxu0 %v1104
    %1534 = vmatpush1.bf16.msra.mxu0 %v1103
    %1535 = vmatprep.subr.bf16.mxu0 %v1108
    %1536 = vmatpush1.bf16.msra.mxu0 %v1107
    %1537 = vmatprep.subr.bf16.mxu0 %v1112
    %1538 = vmatpush1.bf16.msra.mxu0 %v1111
    %1539 = vmatprep.subr.bf16.mxu0 %v1116
    %1540 = vmatpush1.bf16.msra.mxu0 %v1115
    %1541 = vmatprep.subr.bf16.mxu0 %v1120
    %1542 = vmatpush1.bf16.msra.mxu0 %v1119
    %1543 = vmatprep.subr.bf16.mxu0 %v1124
    %1544 = vmatpush1.bf16.msra.mxu0 %v1123
    %1545 = vmatprep.subr.bf16.mxu0 %v1128
    %1546 = vmatpush1.bf16.msra.mxu0 %v1127
    %1547 = vmatprep.mubr.bf16.mxu0 %v382
    %1548 = vmatmul.mubr.bf16.gmra.mrb[0].mxu0 %v381
    %v1549 = vpop.f32.mrb[0].mxu0
    %v1550 = vadd.f32 %v353, %v1549
    %v1551 = vpop.f32.mrb[0].mxu0
    %v1552 = vadd.f32 %v357, %v1551
    %v1553 = vpop.f32.mrb[0].mxu0
    %v1554 = vpop.f32.mrb[0].mxu0
    %1555 = vdwg.mxu0
    %1556 = vmatprep.subr.bf16.mxu0 %v1132
    %1557 = vmatpush1.bf16.msra.mxu0 %v1131
    %1558 = vmatprep.subr.bf16.mxu0 %v1136
    %1559 = vmatpush1.bf16.msra.mxu0 %v1135
    %1560 = vmatprep.subr.bf16.mxu0 %v1140
    %1561 = vmatpush1.bf16.msra.mxu0 %v1139
    %1562 = vmatprep.subr.bf16.mxu0 %v1144
    %1563 = vmatpush1.bf16.msra.mxu0 %v1143
    %1564 = vmatprep.subr.bf16.mxu0 %v1148
    %1565 = vmatpush1.bf16.msra.mxu0 %v1147
    %1566 = vmatprep.subr.bf16.mxu0 %v1152
    %1567 = vmatpush1.bf16.msra.mxu0 %v1151
    %1568 = vmatprep.subr.bf16.mxu0 %v1156
    %1569 = vmatpush1.bf16.msra.mxu0 %v1155
    %1570 = vmatprep.subr.bf16.mxu0 %v1160
    %1571 = vmatpush1.bf16.msra.mxu0 %v1159
    %1572 = vmatprep.subr.bf16.mxu0 %v1164
    %1573 = vmatpush1.bf16.msra.mxu0 %v1163
    %1574 = vmatprep.subr.bf16.mxu0 %v1168
    %1575 = vmatpush1.bf16.msra.mxu0 %v1167
    %1576 = vmatprep.subr.bf16.mxu0 %v1172
    %1577 = vmatpush1.bf16.msra.mxu0 %v1171
    %1578 = vmatprep.subr.bf16.mxu0 %v1176
    %1579 = vmatpush1.bf16.msra.mxu0 %v1175
    %1580 = vmatprep.subr.bf16.mxu0 %v1180
    %1581 = vmatpush1.bf16.msra.mxu0 %v1179
    %1582 = vmatprep.subr.bf16.mxu0 %v1184
    %1583 = vmatpush1.bf16.msra.mxu0 %v1183
    %1584 = vmatprep.subr.bf16.mxu0 %v1188
    %1585 = vmatpush1.bf16.msra.mxu0 %v1187
    %1586 = vmatprep.subr.bf16.mxu0 %v1192
    %1587 = vmatpush1.bf16.msra.mxu0 %v1191
    %1588 = vmatprep.mubr.bf16.mxu0 %v384
    %1589 = vmatmul.mubr.bf16.gmra.mrb[0].mxu0 %v383
    %v1590 = vpop.f32.mrb[0].mxu0
    %v1591 = vadd.f32 %v1550, %v1590
    %v1592 = vpop.f32.mrb[0].mxu0
    %v1593 = vadd.f32 %v1552, %v1592
    %v1594 = vpop.f32.mrb[0].mxu0
    %v1595 = vpop.f32.mrb[0].mxu0
    %1596 = vdwg.mxu0
    %1597 = vmatprep.subr.bf16.mxu0 %v1196
    %1598 = vmatpush1.bf16.msra.mxu0 %v1195
    %1599 = vmatprep.subr.bf16.mxu0 %v1200
    %1600 = vmatpush1.bf16.msra.mxu0 %v1199
    %1601 = vmatprep.subr.bf16.mxu0 %v1204
    %1602 = vmatpush1.bf16.msra.mxu0 %v1203
    %1603 = vmatprep.subr.bf16.mxu0 %v1208
    %1604 = vmatpush1.bf16.msra.mxu0 %v1207
    %1605 = vmatprep.subr.bf16.mxu0 %v1212
    %1606 = vmatpush1.bf16.msra.mxu0 %v1211
    %1607 = vmatprep.subr.bf16.mxu0 %v1216
    %1608 = vmatpush1.bf16.msra.mxu0 %v1215
    %1609 = vmatprep.subr.bf16.mxu0 %v1220
    %1610 = vmatpush1.bf16.msra.mxu0 %v1219
    %1611 = vmatprep.subr.bf16.mxu0 %v1224
    %1612 = vmatpush1.bf16.msra.mxu0 %v1223
    %1613 = vmatprep.subr.bf16.mxu0 %v1228
    %1614 = vmatpush1.bf16.msra.mxu0 %v1227
    %1615 = vmatprep.subr.bf16.mxu0 %v1232
    %1616 = vmatpush1.bf16.msra.mxu0 %v1231
    %1617 = vmatprep.subr.bf16.mxu0 %v1236
    %1618 = vmatpush1.bf16.msra.mxu0 %v1235
    %1619 = vmatprep.subr.bf16.mxu0 %v1240
    %1620 = vmatpush1.bf16.msra.mxu0 %v1239
    %1621 = vmatprep.subr.bf16.mxu0 %v1244
    %1622 = vmatpush1.bf16.msra.mxu0 %v1243
    %1623 = vmatprep.subr.bf16.mxu0 %v1248
    %1624 = vmatpush1.bf16.msra.mxu0 %v1247
    %1625 = vmatprep.subr.bf16.mxu0 %v1252
    %1626 = vmatpush1.bf16.msra.mxu0 %v1251
    %1627 = vmatprep.subr.bf16.mxu0 %v1256
    %1628 = vmatpush1.bf16.msra.mxu0 %v1255
    %1629 = vmatprep.mubr.bf16.mxu0 %v386
    %1630 = vmatmul.mubr.bf16.gmra.mrb[0].mxu0 %v385
    %v1631 = vpop.f32.mrb[0].mxu0
    %v1632 = vadd.f32 %v1591, %v1631
    %v1633 = vpop.f32.mrb[0].mxu0
    %v1634 = vadd.f32 %v1593, %v1633
    %v1635 = vpop.f32.mrb[0].mxu0
    %v1636 = vpop.f32.mrb[0].mxu0
    %1637 = vdwg.mxu0
    %1638 = vmatprep.subr.bf16.mxu0 %v1260
    %1639 = vmatpush1.bf16.msra.mxu0 %v1259
    %1640 = vmatprep.subr.bf16.mxu0 %v1264
    %1641 = vmatpush1.bf16.msra.mxu0 %v1263
    %1642 = vmatprep.subr.bf16.mxu0 %v1268
    %1643 = vmatpush1.bf16.msra.mxu0 %v1267
    %1644 = vmatprep.subr.bf16.mxu0 %v1272
    %1645 = vmatpush1.bf16.msra.mxu0 %v1271
    %1646 = vmatprep.subr.bf16.mxu0 %v1276
    %1647 = vmatpush1.bf16.msra.mxu0 %v1275
    %1648 = vmatprep.subr.bf16.mxu0 %v1280
    %1649 = vmatpush1.bf16.msra.mxu0 %v1279
    %1650 = vmatprep.subr.bf16.mxu0 %v1284
    %1651 = vmatpush1.bf16.msra.mxu0 %v1283
    %1652 = vmatprep.subr.bf16.mxu0 %v1288
    %1653 = vmatpush1.bf16.msra.mxu0 %v1287
    %1654 = vmatprep.subr.bf16.mxu0 0
    %1655 = vmatpush1.bf16.msra.mxu0 0
    %1656 = vmatprep.subr.bf16.mxu0 0
    %1657 = vmatpush1.bf16.msra.mxu0 0
    %1658 = vmatprep.subr.bf16.mxu0 0
    %1659 = vmatpush1.bf16.msra.mxu0 0
    %1660 = vmatprep.subr.bf16.mxu0 0
    %1661 = vmatpush1.bf16.msra.mxu0 0
    %1662 = vmatprep.subr.bf16.mxu0 0
    %1663 = vmatpush1.bf16.msra.mxu0 0
    %1664 = vmatprep.subr.bf16.mxu0 0
    %1665 = vmatpush1.bf16.msra.mxu0 0
    %1666 = vmatprep.subr.bf16.mxu0 0
    %1667 = vmatpush1.bf16.msra.mxu0 0
    %1668 = vmatprep.subr.bf16.mxu0 0
    %1669 = vmatpush1.bf16.msra.mxu0 0
    %1670 = vmatprep.mubr.bf16.mxu0 0
    %1671 = vmatmul.mubr.bf16.gmra.mrb[0].mxu0 %v387
    %v1672 = vpop.f32.mrb[0].mxu0
    %v1673 = vadd.f32 %v1632, %v1672
    %v1674 = vpop.f32.mrb[0].mxu0
    %v1675 = vadd.f32 %v1634, %v1674
    %v1676 = vpop.f32.mrb[0].mxu0
    %v1677 = vpop.f32.mrb[0].mxu0
    %1678 = vdwg.mxu0
    %1679 = vmatprep.subr.bf16.mxu0 %v1070
    %1680 = vmatpush1.bf16.msra.mxu0 %v1069
    %1681 = vmatprep.subr.bf16.mxu0 %v1074
    %1682 = vmatpush1.bf16.msra.mxu0 %v1073
    %1683 = vmatprep.subr.bf16.mxu0 %v1078
    %1684 = vmatpush1.bf16.msra.mxu0 %v1077
    %1685 = vmatprep.subr.bf16.mxu0 %v1082
    %1686 = vmatpush1.bf16.msra.mxu0 %v1081
    %1687 = vmatprep.subr.bf16.mxu0 %v1086
    %1688 = vmatpush1.bf16.msra.mxu0 %v1085
    %1689 = vmatprep.subr.bf16.mxu0 %v1090
    %1690 = vmatpush1.bf16.msra.mxu0 %v1089
    %1691 = vmatprep.subr.bf16.mxu0 %v1094
    %1692 = vmatpush1.bf16.msra.mxu0 %v1093
    %1693 = vmatprep.subr.bf16.mxu0 %v1098
    %1694 = vmatpush1.bf16.msra.mxu0 %v1097
    %1695 = vmatprep.subr.bf16.mxu0 %v1102
    %1696 = vmatpush1.bf16.msra.mxu0 %v1101
    %1697 = vmatprep.subr.bf16.mxu0 %v1106
    %1698 = vmatpush1.bf16.msra.mxu0 %v1105
    %1699 = vmatprep.subr.bf16.mxu0 %v1110
    %1700 = vmatpush1.bf16.msra.mxu0 %v1109
    %1701 = vmatprep.subr.bf16.mxu0 %v1114
    %1702 = vmatpush1.bf16.msra.mxu0 %v1113
    %1703 = vmatprep.subr.bf16.mxu0 %v1118
    %1704 = vmatpush1.bf16.msra.mxu0 %v1117
    %1705 = vmatprep.subr.bf16.mxu0 %v1122
    %1706 = vmatpush1.bf16.msra.mxu0 %v1121
    %1707 = vmatprep.subr.bf16.mxu0 %v1126
    %1708 = vmatpush1.bf16.msra.mxu0 %v1125
    %1709 = vmatprep.subr.bf16.mxu0 %v1130
    %1710 = vmatpush1.bf16.msra.mxu0 %v1129
    %1711 = vmatprep.mubr.bf16.mxu0 %v382
    %1712 = vmatmul.mubr.bf16.gmra.mrb[0].mxu0 %v381
    %v1713 = vpop.f32.mrb[0].mxu0
    %v1714 = vadd.f32 %v361, %v1713
    %v1715 = vpop.f32.mrb[0].mxu0
    %v1716 = vadd.f32 %v365, %v1715
    %v1717 = vpop.f32.mrb[0].mxu0
    %v1718 = vpop.f32.mrb[0].mxu0
    %1719 = vdwg.mxu0
    %1720 = vmatprep.subr.bf16.mxu0 %v1134
    %1721 = vmatpush1.bf16.msra.mxu0 %v1133
    %1722 = vmatprep.subr.bf16.mxu0 %v1138
    %1723 = vmatpush1.bf16.msra.mxu0 %v1137
    %1724 = vmatprep.subr.bf16.mxu0 %v1142
    %1725 = vmatpush1.bf16.msra.mxu0 %v1141
    %1726 = vmatprep.subr.bf16.mxu0 %v1146
    %1727 = vmatpush1.bf16.msra.mxu0 %v1145
    %1728 = vmatprep.subr.bf16.mxu0 %v1150
    %1729 = vmatpush1.bf16.msra.mxu0 %v1149
    %1730 = vmatprep.subr.bf16.mxu0 %v1154
    %1731 = vmatpush1.bf16.msra.mxu0 %v1153
    %1732 = vmatprep.subr.bf16.mxu0 %v1158
    %1733 = vmatpush1.bf16.msra.mxu0 %v1157
    %1734 = vmatprep.subr.bf16.mxu0 %v1162
    %1735 = vmatpush1.bf16.msra.mxu0 %v1161
    %1736 = vmatprep.subr.bf16.mxu0 %v1166
    %1737 = vmatpush1.bf16.msra.mxu0 %v1165
    %1738 = vmatprep.subr.bf16.mxu0 %v1170
    %1739 = vmatpush1.bf16.msra.mxu0 %v1169
    %1740 = vmatprep.subr.bf16.mxu0 %v1174
    %1741 = vmatpush1.bf16.msra.mxu0 %v1173
    %1742 = vmatprep.subr.bf16.mxu0 %v1178
    %1743 = vmatpush1.bf16.msra.mxu0 %v1177
    %1744 = vmatprep.subr.bf16.mxu0 %v1182
    %1745 = vmatpush1.bf16.msra.mxu0 %v1181
    %1746 = vmatprep.subr.bf16.mxu0 %v1186
    %1747 = vmatpush1.bf16.msra.mxu0 %v1185
    %1748 = vmatprep.subr.bf16.mxu0 %v1190
    %1749 = vmatpush1.bf16.msra.mxu0 %v1189
    %1750 = vmatprep.subr.bf16.mxu0 %v1194
    %1751 = vmatpush1.bf16.msra.mxu0 %v1193
    %1752 = vmatprep.mubr.bf16.mxu0 %v384
    %1753 = vmatmul.mubr.bf16.gmra.mrb[0].mxu0 %v383
    %v1754 = vpop.f32.mrb[0].mxu0
    %v1755 = vadd.f32 %v1714, %v1754
    %v1756 = vpop.f32.mrb[0].mxu0
    %v1757 = vadd.f32 %v1716, %v1756
    %v1758 = vpop.f32.mrb[0].mxu0
    %v1759 = vpop.f32.mrb[0].mxu0
    %1760 = vdwg.mxu0
    %1761 = vmatprep.subr.bf16.mxu0 %v1198
    %1762 = vmatpush1.bf16.msra.mxu0 %v1197
    %1763 = vmatprep.subr.bf16.mxu0 %v1202
    %1764 = vmatpush1.bf16.msra.mxu0 %v1201
    %1765 = vmatprep.subr.bf16.mxu0 %v1206
    %1766 = vmatpush1.bf16.msra.mxu0 %v1205
    %1767 = vmatprep.subr.bf16.mxu0 %v1210
    %1768 = vmatpush1.bf16.msra.mxu0 %v1209
    %1769 = vmatprep.subr.bf16.mxu0 %v1214
    %1770 = vmatpush1.bf16.msra.mxu0 %v1213
    %1771 = vmatprep.subr.bf16.mxu0 %v1218
    %1772 = vmatpush1.bf16.msra.mxu0 %v1217
    %1773 = vmatprep.subr.bf16.mxu0 %v1222
    %1774 = vmatpush1.bf16.msra.mxu0 %v1221
    %1775 = vmatprep.subr.bf16.mxu0 %v1226
    %1776 = vmatpush1.bf16.msra.mxu0 %v1225
    %1777 = vmatprep.subr.bf16.mxu0 %v1230
    %1778 = vmatpush1.bf16.msra.mxu0 %v1229
    %1779 = vmatprep.subr.bf16.mxu0 %v1234
    %1780 = vmatpush1.bf16.msra.mxu0 %v1233
    %1781 = vmatprep.subr.bf16.mxu0 %v1238
    %1782 = vmatpush1.bf16.msra.mxu0 %v1237
    %1783 = vmatprep.subr.bf16.mxu0 %v1242
    %1784 = vmatpush1.bf16.msra.mxu0 %v1241
    %1785 = vmatprep.subr.bf16.mxu0 %v1246
    %1786 = vmatpush1.bf16.msra.mxu0 %v1245
    %1787 = vmatprep.subr.bf16.mxu0 %v1250
    %1788 = vmatpush1.bf16.msra.mxu0 %v1249
    %1789 = vmatprep.subr.bf16.mxu0 %v1254
    %1790 = vmatpush1.bf16.msra.mxu0 %v1253
    %1791 = vmatprep.subr.bf16.mxu0 %v1258
    %1792 = vmatpush1.bf16.msra.mxu0 %v1257
    %1793 = vmatprep.mubr.bf16.mxu0 %v386
    %1794 = vmatmul.mubr.bf16.gmra.mrb[0].mxu0 %v385
    %v1795 = vpop.f32.mrb[0].mxu0
    %v1796 = vadd.f32 %v1755, %v1795
    %v1797 = vpop.f32.mrb[0].mxu0
    %v1798 = vadd.f32 %v1757, %v1797
    %v1799 = vpop.f32.mrb[0].mxu0
    %v1800 = vpop.f32.mrb[0].mxu0
    %1801 = vdwg.mxu0
    %1802 = vmatprep.subr.bf16.mxu0 %v1262
    %1803 = vmatpush1.bf16.msra.mxu0 %v1261
    %1804 = vmatprep.subr.bf16.mxu0 %v1266
    %1805 = vmatpush1.bf16.msra.mxu0 %v1265
    %1806 = vmatprep.subr.bf16.mxu0 %v1270
    %1807 = vmatpush1.bf16.msra.mxu0 %v1269
    %1808 = vmatprep.subr.bf16.mxu0 %v1274
    %1809 = vmatpush1.bf16.msra.mxu0 %v1273
    %1810 = vmatprep.subr.bf16.mxu0 %v1278
    %1811 = vmatpush1.bf16.msra.mxu0 %v1277
    %1812 = vmatprep.subr.bf16.mxu0 %v1282
    %1813 = vmatpush1.bf16.msra.mxu0 %v1281
    %1814 = vmatprep.subr.bf16.mxu0 %v1286
    %1815 = vmatpush1.bf16.msra.mxu0 %v1285
    %1816 = vmatprep.subr.bf16.mxu0 %v1290
    %1817 = vmatpush1.bf16.msra.mxu0 %v1289
    %1818 = vmatprep.subr.bf16.mxu0 0
    %1819 = vmatpush1.bf16.msra.mxu0 0
    %1820 = vmatprep.subr.bf16.mxu0 0
    %1821 = vmatpush1.bf16.msra.mxu0 0
    %1822 = vmatprep.subr.bf16.mxu0 0
    %1823 = vmatpush1.bf16.msra.mxu0 0
    %1824 = vmatprep.subr.bf16.mxu0 0
    %1825 = vmatpush1.bf16.msra.mxu0 0
    %1826 = vmatprep.subr.bf16.mxu0 0
    %1827 = vmatpush1.bf16.msra.mxu0 0
    %1828 = vmatprep.subr.bf16.mxu0 0
    %1829 = vmatpush1.bf16.msra.mxu0 0
    %1830 = vmatprep.subr.bf16.mxu0 0
    %1831 = vmatpush1.bf16.msra.mxu0 0
    %1832 = vmatprep.subr.bf16.mxu0 0
    %1833 = vmatpush1.bf16.msra.mxu0 0
    %1834 = vmatprep.mubr.bf16.mxu0 0
    %1835 = vmatmul.mubr.bf16.gmra.mrb[0].mxu0 %v387
    %v1836 = vpop.f32.mrb[0].mxu0
    %v1837 = vadd.f32 %v1796, %v1836
    %v1838 = vpop.f32.mrb[0].mxu0
    %v1839 = vadd.f32 %v1798, %v1838
    %v1840 = vpop.f32.mrb[0].mxu0
    %v1841 = vpop.f32.mrb[0].mxu0
    %1842 = vdwg.mxu0
    %v1843 = vmax.f32 %v1673, 0.0
    %v1844 = vmax.f32 %v1675, 0.0
    %v1845 = vmax.f32 %v1837, 0.0
    %v1846 = vmax.f32 %v1839, 0.0
    %v1847 = vpack.c.bf16 %v1843, %v1843
    %v1848 = vpack.c.bf16 %v1844, %v1844
    %v1849 = vpack.c.bf16 %v1845, %v1845
    %v1850 = vpack.c.bf16 %v1846, %v1846
    %v1851 = vld [vmem:[#allocation7] sm:$0xff]
    %v1852 = vld [vmem:[#allocation7 + $0x8] sm:$0xff]
    %v1853 = vld [vmem:[#allocation7 + $0x10] sm:$0xff]
    %v1854 = vld [vmem:[#allocation7 + $0x18] sm:$0xff]
    %v1855 = vld [vmem:[#allocation7 + $0x20] sm:$0xff]
    %v1856 = vld [vmem:[#allocation7 + $0x28] sm:$0xff]
    %v1857 = vld [vmem:[#allocation7 + $0x30] sm:$0xff]
    %v1858 = vld [vmem:[#allocation7 + $0x38] sm:$0xff]
    %v1859 = vld [vmem:[#allocation7 + $0x40] sm:$0xff]
    %v1860 = vld [vmem:[#allocation7 + $0x48] sm:$0xff]
    %v1861 = vld [vmem:[#allocation7 + $0x50] sm:$0xff]
    %v1862 = vld [vmem:[#allocation7 + $0x58] sm:$0xff]
    %v1863 = vld [vmem:[#allocation7 + $0x60] sm:$0xff]
    %v1864 = vld [vmem:[#allocation7 + $0x68] sm:$0xff]
    %v1865 = vld [vmem:[#allocation7 + $0x70] sm:$0xff]
    %v1866 = vld [vmem:[#allocation7 + $0x78] sm:$0xff]
    %v1867 = vld [vmem:[#allocation7 + $0x80] sm:$0xff]
    %v1868 = vld [vmem:[#allocation7 + $0x88] sm:$0xff]
    %v1869 = vld [vmem:[#allocation7 + $0x90] sm:$0xff]
    %v1870 = vld [vmem:[#allocation7 + $0x98] sm:$0xff]
    %v1871 = vld [vmem:[#allocation7 + $0xa0] sm:$0xff]
    %v1872 = vld [vmem:[#allocation7 + $0xa8] sm:$0xff]
    %v1873 = vld [vmem:[#allocation7 + $0xb0] sm:$0xff]
    %v1874 = vld [vmem:[#allocation7 + $0xb8] sm:$0xff]
    %v1875 = vld [vmem:[#allocation7 + $0xc0] sm:$0xff]
    %v1876 = vld [vmem:[#allocation7 + $0xc8] sm:$0xff]
    %v1877 = vld [vmem:[#allocation7 + $0xd0] sm:$0xff]
    %v1878 = vld [vmem:[#allocation7 + $0xd8] sm:$0xff]
    %v1879 = vld [vmem:[#allocation7 + $0xe0] sm:$0xff]
    %v1880 = vld [vmem:[#allocation7 + $0xe8] sm:$0xff]
    %v1881 = vld [vmem:[#allocation7 + $0xf0] sm:$0xff]
    %v1882 = vld [vmem:[#allocation7 + $0xf8] sm:$0xff]
    %v1883 = vld [vmem:[#allocation7 + $0x100] sm:$0xff]
    %v1884 = vld [vmem:[#allocation7 + $0x108] sm:$0xff]
    %v1885 = vld [vmem:[#allocation7 + $0x110] sm:$0xff]
    %v1886 = vld [vmem:[#allocation7 + $0x118] sm:$0xff]
    %v1887 = vld [vmem:[#allocation7 + $0x120] sm:$0xff]
    %v1888 = vld [vmem:[#allocation7 + $0x128] sm:$0xff]
    %v1889 = vld [vmem:[#allocation7 + $0x130] sm:$0xff]
    %v1890 = vld [vmem:[#allocation7 + $0x138] sm:$0xff]
    %v1891 = vld [vmem:[#allocation7 + $0x140] sm:$0xff]
    %v1892 = vld [vmem:[#allocation7 + $0x148] sm:$0xff]
    %v1893 = vld [vmem:[#allocation7 + $0x150] sm:$0xff]
    %v1894 = vld [vmem:[#allocation7 + $0x158] sm:$0xff]
    %v1895 = vld [vmem:[#allocation7 + $0x160] sm:$0xff]
    %v1896 = vld [vmem:[#allocation7 + $0x168] sm:$0xff]
    %v1897 = vld [vmem:[#allocation7 + $0x170] sm:$0xff]
    %v1898 = vld [vmem:[#allocation7 + $0x178] sm:$0xff]
    %v1899 = vld [vmem:[#allocation7 + $0x180] sm:$0xff]
    %v1900 = vld [vmem:[#allocation7 + $0x188] sm:$0xff]
    %v1901 = vld [vmem:[#allocation7 + $0x190] sm:$0xff]
    %v1902 = vld [vmem:[#allocation7 + $0x198] sm:$0xff]
    %v1903 = vld [vmem:[#allocation7 + $0x1a0] sm:$0xff]
    %v1904 = vld [vmem:[#allocation7 + $0x1a8] sm:$0xff]
    %v1905 = vld [vmem:[#allocation7 + $0x1b0] sm:$0xff]
    %v1906 = vld [vmem:[#allocation7 + $0x1b8] sm:$0xff]
    %v1907 = vld [vmem:[#allocation7 + $0x1c0] sm:$0xff]
    %v1908 = vld [vmem:[#allocation7 + $0x1c8] sm:$0xff]
    %v1909 = vld [vmem:[#allocation7 + $0x1d0] sm:$0xff]
    %v1910 = vld [vmem:[#allocation7 + $0x1d8] sm:$0xff]
    %v1911 = vld [vmem:[#allocation7 + $0x1e0] sm:$0xff]
    %v1912 = vld [vmem:[#allocation7 + $0x1e8] sm:$0xff]
    %v1913 = vld [vmem:[#allocation7 + $0x1f0] sm:$0xff]
    %v1914 = vld [vmem:[#allocation7 + $0x1f8] sm:$0xff]
    %v1915 = vld [vmem:[%s4] sm:$0x3]
    %v1917 = vlaneseq
    %v1918 = vshrl.u32 %v1917, 7
    %v1919 = vsub.s32 0, %v1918
    %v1920 = vrot.slane %v1915, %v1919
    %v1921 = vlaneseq
    %v1922 = vshrl.u32 %v1921, 7
    %v1923 = vsub.s32 1, %v1922
    %v1924 = vrot.slane %v1915, %v1923
    %v1991 = vunpack.c.l.b16 %v1851
    %v1992 = vunpack.c.h.b16 %v1851
    %v1993 = vunpack.c.l.b16 %v1852
    %v1994 = vunpack.c.h.b16 %v1852
    %v1995 = vunpack.c.l.b16 %v1853
    %v1996 = vunpack.c.h.b16 %v1853
    %v1997 = vunpack.c.l.b16 %v1854
    %v1998 = vunpack.c.h.b16 %v1854
    %v1999 = vunpack.c.l.b16 %v1855
    %v2000 = vunpack.c.h.b16 %v1855
    %v2001 = vunpack.c.l.b16 %v1856
    %v2002 = vunpack.c.h.b16 %v1856
    %v2003 = vunpack.c.l.b16 %v1857
    %v2004 = vunpack.c.h.b16 %v1857
    %v2005 = vunpack.c.l.b16 %v1858
    %v2006 = vunpack.c.h.b16 %v1858
    %v2007 = vunpack.c.l.b16 %v1859
    %v2008 = vunpack.c.h.b16 %v1859
    %v2009 = vunpack.c.l.b16 %v1860
    %v2010 = vunpack.c.h.b16 %v1860
    %v2011 = vunpack.c.l.b16 %v1861
    %v2012 = vunpack.c.h.b16 %v1861
    %v2013 = vunpack.c.l.b16 %v1862
    %v2014 = vunpack.c.h.b16 %v1862
    %v2015 = vunpack.c.l.b16 %v1863
    %v2016 = vunpack.c.h.b16 %v1863
    %v2017 = vunpack.c.l.b16 %v1864
    %v2018 = vunpack.c.h.b16 %v1864
    %v2019 = vunpack.c.l.b16 %v1865
    %v2020 = vunpack.c.h.b16 %v1865
    %v2021 = vunpack.c.l.b16 %v1866
    %v2022 = vunpack.c.h.b16 %v1866
    %v2023 = vunpack.c.l.b16 %v1867
    %v2024 = vunpack.c.h.b16 %v1867
    %v2025 = vunpack.c.l.b16 %v1868
    %v2026 = vunpack.c.h.b16 %v1868
    %v2027 = vunpack.c.l.b16 %v1869
    %v2028 = vunpack.c.h.b16 %v1869
    %v2029 = vunpack.c.l.b16 %v1870
    %v2030 = vunpack.c.h.b16 %v1870
    %v2031 = vunpack.c.l.b16 %v1871
    %v2032 = vunpack.c.h.b16 %v1871
    %v2033 = vunpack.c.l.b16 %v1872
    %v2034 = vunpack.c.h.b16 %v1872
    %v2035 = vunpack.c.l.b16 %v1873
    %v2036 = vunpack.c.h.b16 %v1873
    %v2037 = vunpack.c.l.b16 %v1874
    %v2038 = vunpack.c.h.b16 %v1874
    %v2039 = vunpack.c.l.b16 %v1875
    %v2040 = vunpack.c.h.b16 %v1875
    %v2041 = vunpack.c.l.b16 %v1876
    %v2042 = vunpack.c.h.b16 %v1876
    %v2043 = vunpack.c.l.b16 %v1877
    %v2044 = vunpack.c.h.b16 %v1877
    %v2045 = vunpack.c.l.b16 %v1878
    %v2046 = vunpack.c.h.b16 %v1878
    %v2047 = vunpack.c.l.b16 %v1879
    %v2048 = vunpack.c.h.b16 %v1879
    %v2049 = vunpack.c.l.b16 %v1880
    %v2050 = vunpack.c.h.b16 %v1880
    %v2051 = vunpack.c.l.b16 %v1881
    %v2052 = vunpack.c.h.b16 %v1881
    %v2053 = vunpack.c.l.b16 %v1882
    %v2054 = vunpack.c.h.b16 %v1882
    %v2055 = vunpack.c.l.b16 %v1883
    %v2056 = vunpack.c.h.b16 %v1883
    %v2057 = vunpack.c.l.b16 %v1884
    %v2058 = vunpack.c.h.b16 %v1884
    %v2059 = vunpack.c.l.b16 %v1885
    %v2060 = vunpack.c.h.b16 %v1885
    %v2061 = vunpack.c.l.b16 %v1886
    %v2062 = vunpack.c.h.b16 %v1886
    %v2063 = vunpack.c.l.b16 %v1887
    %v2064 = vunpack.c.h.b16 %v1887
    %v2065 = vunpack.c.l.b16 %v1888
    %v2066 = vunpack.c.h.b16 %v1888
    %v2067 = vunpack.c.l.b16 %v1889
    %v2068 = vunpack.c.h.b16 %v1889
    %v2069 = vunpack.c.l.b16 %v1890
    %v2070 = vunpack.c.h.b16 %v1890
    %v2071 = vunpack.c.l.b16 %v1891
    %v2072 = vunpack.c.h.b16 %v1891
    %v2073 = vunpack.c.l.b16 %v1892
    %v2074 = vunpack.c.h.b16 %v1892
    %v2075 = vunpack.c.l.b16 %v1893
    %v2076 = vunpack.c.h.b16 %v1893
    %v2077 = vunpack.c.l.b16 %v1894
    %v2078 = vunpack.c.h.b16 %v1894
    %v2079 = vunpack.c.l.b16 %v1895
    %v2080 = vunpack.c.h.b16 %v1895
    %v2081 = vunpack.c.l.b16 %v1896
    %v2082 = vunpack.c.h.b16 %v1896
    %v2083 = vunpack.c.l.b16 %v1897
    %v2084 = vunpack.c.h.b16 %v1897
    %v2085 = vunpack.c.l.b16 %v1898
    %v2086 = vunpack.c.h.b16 %v1898
    %v2087 = vunpack.c.l.b16 %v1899
    %v2088 = vunpack.c.h.b16 %v1899
    %v2089 = vunpack.c.l.b16 %v1900
    %v2090 = vunpack.c.h.b16 %v1900
    %v2091 = vunpack.c.l.b16 %v1901
    %v2092 = vunpack.c.h.b16 %v1901
    %v2093 = vunpack.c.l.b16 %v1902
    %v2094 = vunpack.c.h.b16 %v1902
    %v2095 = vunpack.c.l.b16 %v1903
    %v2096 = vunpack.c.h.b16 %v1903
    %v2097 = vunpack.c.l.b16 %v1904
    %v2098 = vunpack.c.h.b16 %v1904
    %v2099 = vunpack.c.l.b16 %v1905
    %v2100 = vunpack.c.h.b16 %v1905
    %v2101 = vunpack.c.l.b16 %v1906
    %v2102 = vunpack.c.h.b16 %v1906
    %v2103 = vunpack.c.l.b16 %v1907
    %v2104 = vunpack.c.h.b16 %v1907
    %v2105 = vunpack.c.l.b16 %v1908
    %v2106 = vunpack.c.h.b16 %v1908
    %v2107 = vunpack.c.l.b16 %v1909
    %v2108 = vunpack.c.h.b16 %v1909
    %v2109 = vunpack.c.l.b16 %v1910
    %v2110 = vunpack.c.h.b16 %v1910
    %v2111 = vunpack.c.l.b16 %v1911
    %v2112 = vunpack.c.h.b16 %v1911
    %v2113 = vunpack.c.l.b16 %v1912
    %v2114 = vunpack.c.h.b16 %v1912
    %v2115 = vunpack.c.l.b16 %v1913
    %v2116 = vunpack.c.h.b16 %v1913
    %v2117 = vunpack.c.l.b16 %v1914
    %v2118 = vunpack.c.h.b16 %v1914
    %v2119 = vpack.c.b16 %v1993, %v1991
    %v2120 = vpack.c.b16 %v1994, %v1992
    %v2121 = vpack.c.b16 %v1997, %v1995
    %v2122 = vpack.c.b16 %v1998, %v1996
    %v2123 = vpack.c.b16 %v2001, %v1999
    %v2124 = vpack.c.b16 %v2002, %v2000
    %v2125 = vpack.c.b16 %v2005, %v2003
    %v2126 = vpack.c.b16 %v2006, %v2004
    %v2127 = vpack.c.b16 %v2009, %v2007
    %v2128 = vpack.c.b16 %v2010, %v2008
    %v2129 = vpack.c.b16 %v2013, %v2011
    %v2130 = vpack.c.b16 %v2014, %v2012
    %v2131 = vpack.c.b16 %v2017, %v2015
    %v2132 = vpack.c.b16 %v2018, %v2016
    %v2133 = vpack.c.b16 %v2021, %v2019
    %v2134 = vpack.c.b16 %v2022, %v2020
    %v2135 = vpack.c.b16 %v2025, %v2023
    %v2136 = vpack.c.b16 %v2026, %v2024
    %v2137 = vpack.c.b16 %v2029, %v2027
    %v2138 = vpack.c.b16 %v2030, %v2028
    %v2139 = vpack.c.b16 %v2033, %v2031
    %v2140 = vpack.c.b16 %v2034, %v2032
    %v2141 = vpack.c.b16 %v2037, %v2035
    %v2142 = vpack.c.b16 %v2038, %v2036
    %v2143 = vpack.c.b16 %v2041, %v2039
    %v2144 = vpack.c.b16 %v2042, %v2040
    %v2145 = vpack.c.b16 %v2045, %v2043
    %v2146 = vpack.c.b16 %v2046, %v2044
    %v2147 = vpack.c.b16 %v2049, %v2047
    %v2148 = vpack.c.b16 %v2050, %v2048
    %v2149 = vpack.c.b16 %v2053, %v2051
    %v2150 = vpack.c.b16 %v2054, %v2052
    %v2151 = vpack.c.b16 %v2057, %v2055
    %v2152 = vpack.c.b16 %v2058, %v2056
    %v2153 = vpack.c.b16 %v2061, %v2059
    %v2154 = vpack.c.b16 %v2062, %v2060
    %v2155 = vpack.c.b16 %v2065, %v2063
    %v2156 = vpack.c.b16 %v2066, %v2064
    %v2157 = vpack.c.b16 %v2069, %v2067
    %v2158 = vpack.c.b16 %v2070, %v2068
    %v2159 = vpack.c.b16 %v2073, %v2071
    %v2160 = vpack.c.b16 %v2074, %v2072
    %v2161 = vpack.c.b16 %v2077, %v2075
    %v2162 = vpack.c.b16 %v2078, %v2076
    %v2163 = vpack.c.b16 %v2081, %v2079
    %v2164 = vpack.c.b16 %v2082, %v2080
    %v2165 = vpack.c.b16 %v2085, %v2083
    %v2166 = vpack.c.b16 %v2086, %v2084
    %v2167 = vpack.c.b16 %v2089, %v2087
    %v2168 = vpack.c.b16 %v2090, %v2088
    %v2169 = vpack.c.b16 %v2093, %v2091
    %v2170 = vpack.c.b16 %v2094, %v2092
    %v2171 = vpack.c.b16 %v2097, %v2095
    %v2172 = vpack.c.b16 %v2098, %v2096
    %v2173 = vpack.c.b16 %v2101, %v2099
    %v2174 = vpack.c.b16 %v2102, %v2100
    %v2175 = vpack.c.b16 %v2105, %v2103
    %v2176 = vpack.c.b16 %v2106, %v2104
    %v2177 = vpack.c.b16 %v2109, %v2107
    %v2178 = vpack.c.b16 %v2110, %v2108
    %v2179 = vpack.c.b16 %v2113, %v2111
    %v2180 = vpack.c.b16 %v2114, %v2112
    %v2181 = vpack.c.b16 %v2117, %v2115
    %v2182 = vpack.c.b16 %v2118, %v2116
    %2247 = vmatprep.subr.bf16.mxu0 %v2120
    %2248 = vmatpush1.bf16.msra.mxu0 %v2119
    %2249 = vmatprep.subr.bf16.mxu0 %v2122
    %2250 = vmatpush1.bf16.msra.mxu0 %v2121
    %2251 = vmatprep.subr.bf16.mxu0 %v2124
    %2252 = vmatpush1.bf16.msra.mxu0 %v2123
    %2253 = vmatprep.subr.bf16.mxu0 %v2126
    %2254 = vmatpush1.bf16.msra.mxu0 %v2125
    %2255 = vmatprep.subr.bf16.mxu0 %v2128
    %2256 = vmatpush1.bf16.msra.mxu0 %v2127
    %2257 = vmatprep.subr.bf16.mxu0 %v2130
    %2258 = vmatpush1.bf16.msra.mxu0 %v2129
    %2259 = vmatprep.subr.bf16.mxu0 %v2132
    %2260 = vmatpush1.bf16.msra.mxu0 %v2131
    %2261 = vmatprep.subr.bf16.mxu0 %v2134
    %2262 = vmatpush1.bf16.msra.mxu0 %v2133
    %2263 = vmatprep.subr.bf16.mxu0 %v2136
    %2264 = vmatpush1.bf16.msra.mxu0 %v2135
    %2265 = vmatprep.subr.bf16.mxu0 %v2138
    %2266 = vmatpush1.bf16.msra.mxu0 %v2137
    %2267 = vmatprep.subr.bf16.mxu0 %v2140
    %2268 = vmatpush1.bf16.msra.mxu0 %v2139
    %2269 = vmatprep.subr.bf16.mxu0 %v2142
    %2270 = vmatpush1.bf16.msra.mxu0 %v2141
    %2271 = vmatprep.subr.bf16.mxu0 %v2144
    %2272 = vmatpush1.bf16.msra.mxu0 %v2143
    %2273 = vmatprep.subr.bf16.mxu0 %v2146
    %2274 = vmatpush1.bf16.msra.mxu0 %v2145
    %2275 = vmatprep.subr.bf16.mxu0 %v2148
    %2276 = vmatpush1.bf16.msra.mxu0 %v2147
    %2277 = vmatprep.subr.bf16.mxu0 %v2150
    %2278 = vmatpush1.bf16.msra.mxu0 %v2149
    %2279 = vmatprep.mubr.bf16.mxu0 %v1848
    %2280 = vmatmul.mubr.bf16.gmra.mrb[0].mxu0 %v1847
    %v2281 = vpop.f32.mrb[0].mxu0
    %v2282 = vadd.f32 %v1920, %v2281
    %v2283 = vpop.f32.mrb[0].mxu0
    %v2284 = vadd.f32 %v1924, %v2283
    %v2285 = vpop.f32.mrb[0].mxu0
    %v2286 = vpop.f32.mrb[0].mxu0
    %2287 = vdwg.mxu0
    %2288 = vmatprep.subr.bf16.mxu0 %v2152
    %2289 = vmatpush1.bf16.msra.mxu0 %v2151
    %2290 = vmatprep.subr.bf16.mxu0 %v2154
    %2291 = vmatpush1.bf16.msra.mxu0 %v2153
    %2292 = vmatprep.subr.bf16.mxu0 %v2156
    %2293 = vmatpush1.bf16.msra.mxu0 %v2155
    %2294 = vmatprep.subr.bf16.mxu0 %v2158
    %2295 = vmatpush1.bf16.msra.mxu0 %v2157
    %2296 = vmatprep.subr.bf16.mxu0 %v2160
    %2297 = vmatpush1.bf16.msra.mxu0 %v2159
    %2298 = vmatprep.subr.bf16.mxu0 %v2162
    %2299 = vmatpush1.bf16.msra.mxu0 %v2161
    %2300 = vmatprep.subr.bf16.mxu0 %v2164
    %2301 = vmatpush1.bf16.msra.mxu0 %v2163
    %2302 = vmatprep.subr.bf16.mxu0 %v2166
    %2303 = vmatpush1.bf16.msra.mxu0 %v2165
    %2304 = vmatprep.subr.bf16.mxu0 %v2168
    %2305 = vmatpush1.bf16.msra.mxu0 %v2167
    %2306 = vmatprep.subr.bf16.mxu0 %v2170
    %2307 = vmatpush1.bf16.msra.mxu0 %v2169
    %2308 = vmatprep.subr.bf16.mxu0 %v2172
    %2309 = vmatpush1.bf16.msra.mxu0 %v2171
    %2310 = vmatprep.subr.bf16.mxu0 %v2174
    %2311 = vmatpush1.bf16.msra.mxu0 %v2173
    %2312 = vmatprep.subr.bf16.mxu0 %v2176
    %2313 = vmatpush1.bf16.msra.mxu0 %v2175
    %2314 = vmatprep.subr.bf16.mxu0 %v2178
    %2315 = vmatpush1.bf16.msra.mxu0 %v2177
    %2316 = vmatprep.subr.bf16.mxu0 %v2180
    %2317 = vmatpush1.bf16.msra.mxu0 %v2179
    %2318 = vmatprep.subr.bf16.mxu0 %v2182
    %2319 = vmatpush1.bf16.msra.mxu0 %v2181
    %2320 = vmatprep.mubr.bf16.mxu0 %v1850
    %2321 = vmatmul.mubr.bf16.gmra.mrb[0].mxu0 %v1849
    %v2322 = vpop.f32.mrb[0].mxu0
    %v2323 = vadd.f32 %v2282, %v2322
    %v2324 = vpop.f32.mrb[0].mxu0
    %v2325 = vadd.f32 %v2284, %v2324
    %v2326 = vpop.f32.mrb[0].mxu0
    %v2327 = vpop.f32.mrb[0].mxu0
    %2328 = vdwg.mxu0
    %v2329 = vmax.f32 %v2323, 0.0
    %v2330 = vmax.f32 %v2325, 0.0
    %v2331 = vpack.c.bf16 %v2329, %v2329
    %v2332 = vpack.c.bf16 %v2330, %v2330
    %v2333 = vld [vmem:[#allocation8] sm:$0xf]
    %v2334 = vld [vmem:[#allocation8 + $0x4] sm:$0xf]
    %v2335 = vld [vmem:[#allocation8 + $0x8] sm:$0xf]
    %v2336 = vld [vmem:[#allocation8 + $0xc] sm:$0xf]
    %v2337 = vld [vmem:[#allocation8 + $0x10] sm:$0xf]
    %v2338 = vld [vmem:[#allocation8 + $0x14] sm:$0xf]
    %v2339 = vld [vmem:[#allocation8 + $0x18] sm:$0xf]
    %v2340 = vld [vmem:[#allocation8 + $0x1c] sm:$0xf]
    %v2341 = vld [vmem:[#allocation8 + $0x20] sm:$0xf]
    %v2342 = vld [vmem:[#allocation8 + $0x24] sm:$0xf]
    %v2343 = vld [vmem:[#allocation8 + $0x28] sm:$0xf]
    %v2344 = vld [vmem:[#allocation8 + $0x2c] sm:$0xf]
    %v2345 = vld [vmem:[#allocation8 + $0x30] sm:$0xf]
    %v2346 = vld [vmem:[#allocation8 + $0x34] sm:$0xf]
    %v2347 = vld [vmem:[#allocation8 + $0x38] sm:$0xf]
    %v2348 = vld [vmem:[#allocation8 + $0x3c] sm:$0xf]
    %v2349 = vld [vmem:[#allocation8 + $0x40] sm:$0xf]
    %v2350 = vld [vmem:[#allocation8 + $0x44] sm:$0xf]
    %v2351 = vld [vmem:[#allocation8 + $0x48] sm:$0xf]
    %v2352 = vld [vmem:[#allocation8 + $0x4c] sm:$0xf]
    %v2353 = vld [vmem:[#allocation8 + $0x50] sm:$0xf]
    %v2354 = vld [vmem:[#allocation8 + $0x54] sm:$0xf]
    %v2355 = vld [vmem:[#allocation8 + $0x58] sm:$0xf]
    %v2356 = vld [vmem:[#allocation8 + $0x5c] sm:$0xf]
    %v2357 = vld [vmem:[#allocation8 + $0x60] sm:$0xf]
    %v2358 = vld [vmem:[#allocation8 + $0x64] sm:$0xf]
    %v2359 = vld [vmem:[#allocation8 + $0x68] sm:$0xf]
    %v2360 = vld [vmem:[#allocation8 + $0x6c] sm:$0xf]
    %v2361 = vld [vmem:[#allocation8 + $0x70] sm:$0xf]
    %v2362 = vld [vmem:[#allocation8 + $0x74] sm:$0xf]
    %v2363 = vld [vmem:[#allocation8 + $0x78] sm:$0xf]
    %v2364 = vld [vmem:[#allocation8 + $0x7c] sm:$0xf]
    %v2365 = vld [vmem:[%s6] sm:$0x1]
    %v2367 = vlaneseq
    %v2368 = vshrl.u32 %v2367, 7
    %v2369 = vsub.s32 0, %v2368
    %v2370 = vrot.slane %v2365, %v2369
    %v2404 = vunpack.c.l.b16 %v2333
    %v2405 = vunpack.c.l.b16 %v2334
    %v2406 = vunpack.c.l.b16 %v2335
    %v2407 = vunpack.c.l.b16 %v2336
    %v2408 = vunpack.c.l.b16 %v2337
    %v2409 = vunpack.c.l.b16 %v2338
    %v2410 = vunpack.c.l.b16 %v2339
    %v2411 = vunpack.c.l.b16 %v2340
    %v2412 = vunpack.c.l.b16 %v2341
    %v2413 = vunpack.c.l.b16 %v2342
    %v2414 = vunpack.c.l.b16 %v2343
    %v2415 = vunpack.c.l.b16 %v2344
    %v2416 = vunpack.c.l.b16 %v2345
    %v2417 = vunpack.c.l.b16 %v2346
    %v2418 = vunpack.c.l.b16 %v2347
    %v2419 = vunpack.c.l.b16 %v2348
    %v2420 = vunpack.c.l.b16 %v2349
    %v2421 = vunpack.c.l.b16 %v2350
    %v2422 = vunpack.c.l.b16 %v2351
    %v2423 = vunpack.c.l.b16 %v2352
    %v2424 = vunpack.c.l.b16 %v2353
    %v2425 = vunpack.c.l.b16 %v2354
    %v2426 = vunpack.c.l.b16 %v2355
    %v2427 = vunpack.c.l.b16 %v2356
    %v2428 = vunpack.c.l.b16 %v2357
    %v2429 = vunpack.c.l.b16 %v2358
    %v2430 = vunpack.c.l.b16 %v2359
    %v2431 = vunpack.c.l.b16 %v2360
    %v2432 = vunpack.c.l.b16 %v2361
    %v2433 = vunpack.c.l.b16 %v2362
    %v2434 = vunpack.c.l.b16 %v2363
    %v2435 = vunpack.c.l.b16 %v2364
    %v2436 = vpack.c.b16 %v2405, %v2404
    %v2437 = vpack.c.b16 %v2407, %v2406
    %v2438 = vpack.c.b16 %v2409, %v2408
    %v2439 = vpack.c.b16 %v2411, %v2410
    %v2440 = vpack.c.b16 %v2413, %v2412
    %v2441 = vpack.c.b16 %v2415, %v2414
    %v2442 = vpack.c.b16 %v2417, %v2416
    %v2443 = vpack.c.b16 %v2419, %v2418
    %v2444 = vpack.c.b16 %v2421, %v2420
    %v2445 = vpack.c.b16 %v2423, %v2422
    %v2446 = vpack.c.b16 %v2425, %v2424
    %v2447 = vpack.c.b16 %v2427, %v2426
    %v2448 = vpack.c.b16 %v2429, %v2428
    %v2449 = vpack.c.b16 %v2431, %v2430
    %v2450 = vpack.c.b16 %v2433, %v2432
    %v2451 = vpack.c.b16 %v2435, %v2434
    %2468 = vmatprep.subr.bf16.mxu0 0
    %2469 = vmatpush1.bf16.msra.mxu0 %v2436
    %2470 = vmatprep.subr.bf16.mxu0 0
    %2471 = vmatpush1.bf16.msra.mxu0 %v2437
    %2472 = vmatprep.subr.bf16.mxu0 0
    %2473 = vmatpush1.bf16.msra.mxu0 %v2438
    %2474 = vmatprep.subr.bf16.mxu0 0
    %2475 = vmatpush1.bf16.msra.mxu0 %v2439
    %2476 = vmatprep.subr.bf16.mxu0 0
    %2477 = vmatpush1.bf16.msra.mxu0 %v2440
    %2478 = vmatprep.subr.bf16.mxu0 0
    %2479 = vmatpush1.bf16.msra.mxu0 %v2441
    %2480 = vmatprep.subr.bf16.mxu0 0
    %2481 = vmatpush1.bf16.msra.mxu0 %v2442
    %2482 = vmatprep.subr.bf16.mxu0 0
    %2483 = vmatpush1.bf16.msra.mxu0 %v2443
    %2484 = vmatprep.subr.bf16.mxu0 0
    %2485 = vmatpush1.bf16.msra.mxu0 %v2444
    %2486 = vmatprep.subr.bf16.mxu0 0
    %2487 = vmatpush1.bf16.msra.mxu0 %v2445
    %2488 = vmatprep.subr.bf16.mxu0 0
    %2489 = vmatpush1.bf16.msra.mxu0 %v2446
    %2490 = vmatprep.subr.bf16.mxu0 0
    %2491 = vmatpush1.bf16.msra.mxu0 %v2447
    %2492 = vmatprep.subr.bf16.mxu0 0
    %2493 = vmatpush1.bf16.msra.mxu0 %v2448
    %2494 = vmatprep.subr.bf16.mxu0 0
    %2495 = vmatpush1.bf16.msra.mxu0 %v2449
    %2496 = vmatprep.subr.bf16.mxu0 0
    %2497 = vmatpush1.bf16.msra.mxu0 %v2450
    %2498 = vmatprep.subr.bf16.mxu0 0
    %2499 = vmatpush1.bf16.msra.mxu0 %v2451
    %2500 = vmatprep.mubr.bf16.mxu0 %v2332
    %2501 = vmatmul.mubr.bf16.gmra.mrb[0].mxu0 %v2331
    %v2502 = vpop.f32.mrb[0].mxu0
    %v2503 = vadd.f32 %v2370, %v2502
    %v2504 = vpop.f32.mrb[0].mxu0
    %v2505 = vpop.f32.mrb[0].mxu0
    %v2506 = vpop.f32.mrb[0].mxu0
    %2507 = vdwg.mxu0
    %v2508 = vmax.f32 %v2503, 0.0
    %v2509 = vpack.c.bf16 %v2508, %v2508
    %v2510 = vld [vmem:[#allocation10] sm:$0xf]
    %v2511 = vld [vmem:[#allocation10 + $0x4] sm:$0xf]
    %v2512 = vld [vmem:[#allocation10 + $0x8] sm:$0xf]
    %v2513 = vld [vmem:[#allocation10 + $0xc] sm:$0xf]
    %v2514 = vld [vmem:[#allocation10 + $0x10] sm:$0xf]
    %v2515 = vld [vmem:[#allocation10 + $0x14] sm:$0xf]
    %v2516 = vld [vmem:[#allocation10 + $0x18] sm:$0xf]
    %v2517 = vld [vmem:[#allocation10 + $0x1c] sm:$0xf]
    %v2518 = vld [vmem:[#allocation10 + $0x20] sm:$0xf]
    %v2519 = vld [vmem:[#allocation10 + $0x24] sm:$0xf]
    %v2520 = vld [vmem:[#allocation10 + $0x28] sm:$0xf]
    %v2521 = vld [vmem:[#allocation10 + $0x2c] sm:$0xf]
    %v2522 = vld [vmem:[#allocation10 + $0x30] sm:$0xf]
    %v2523 = vld [vmem:[#allocation10 + $0x34] sm:$0xf]
    %v2524 = vld [vmem:[#allocation10 + $0x38] sm:$0xf]
    %v2525 = vld [vmem:[#allocation10 + $0x3c] sm:$0xf]
    %v2526 = vld [vmem:[%s8] sm:$0x1]
    %v2528 = vlaneseq
    %v2529 = vshrl.u32 %v2528, 7
    %v2530 = vsub.s32 0, %v2529
    %v2531 = vrot.slane %v2526, %v2530
    %v2549 = vunpack.c.l.b16 %v2510
    %v2550 = vunpack.c.l.b16 %v2511
    %v2551 = vunpack.c.l.b16 %v2512
    %v2552 = vunpack.c.l.b16 %v2513
    %v2553 = vunpack.c.l.b16 %v2514
    %v2554 = vunpack.c.l.b16 %v2515
    %v2555 = vunpack.c.l.b16 %v2516
    %v2556 = vunpack.c.l.b16 %v2517
    %v2557 = vunpack.c.l.b16 %v2518
    %v2558 = vunpack.c.l.b16 %v2519
    %v2559 = vunpack.c.l.b16 %v2520
    %v2560 = vunpack.c.l.b16 %v2521
    %v2561 = vunpack.c.l.b16 %v2522
    %v2562 = vunpack.c.l.b16 %v2523
    %v2563 = vunpack.c.l.b16 %v2524
    %v2564 = vunpack.c.l.b16 %v2525
    %v2565 = vpack.c.b16 %v2550, %v2549
    %v2566 = vpack.c.b16 %v2552, %v2551
    %v2567 = vpack.c.b16 %v2554, %v2553
    %v2568 = vpack.c.b16 %v2556, %v2555
    %v2569 = vpack.c.b16 %v2558, %v2557
    %v2570 = vpack.c.b16 %v2560, %v2559
    %v2571 = vpack.c.b16 %v2562, %v2561
    %v2572 = vpack.c.b16 %v2564, %v2563
    %2581 = vmatprep.subr.bf16.mxu0 0
    %2582 = vmatpush1.bf16.msra.mxu0 %v2565
    %2583 = vmatprep.subr.bf16.mxu0 0
    %2584 = vmatpush1.bf16.msra.mxu0 %v2566
    %2585 = vmatprep.subr.bf16.mxu0 0
    %2586 = vmatpush1.bf16.msra.mxu0 %v2567
    %2587 = vmatprep.subr.bf16.mxu0 0
    %2588 = vmatpush1.bf16.msra.mxu0 %v2568
    %2589 = vmatprep.subr.bf16.mxu0 0
    %2590 = vmatpush1.bf16.msra.mxu0 %v2569
    %2591 = vmatprep.subr.bf16.mxu0 0
    %2592 = vmatpush1.bf16.msra.mxu0 %v2570
    %2593 = vmatprep.subr.bf16.mxu0 0
    %2594 = vmatpush1.bf16.msra.mxu0 %v2571
    %2595 = vmatprep.subr.bf16.mxu0 0
    %2596 = vmatpush1.bf16.msra.mxu0 %v2572
    %2597 = vmatprep.subr.bf16.mxu0 0
    %2598 = vmatpush1.bf16.msra.mxu0 0
    %2599 = vmatprep.subr.bf16.mxu0 0
    %2600 = vmatpush1.bf16.msra.mxu0 0
    %2601 = vmatprep.subr.bf16.mxu0 0
    %2602 = vmatpush1.bf16.msra.mxu0 0
    %2603 = vmatprep.subr.bf16.mxu0 0
    %2604 = vmatpush1.bf16.msra.mxu0 0
    %2605 = vmatprep.subr.bf16.mxu0 0
    %2606 = vmatpush1.bf16.msra.mxu0 0
    %2607 = vmatprep.subr.bf16.mxu0 0
    %2608 = vmatpush1.bf16.msra.mxu0 0
    %2609 = vmatprep.subr.bf16.mxu0 0
    %2610 = vmatpush1.bf16.msra.mxu0 0
    %2611 = vmatprep.subr.bf16.mxu0 0
    %2612 = vmatpush1.bf16.msra.mxu0 0
    %2613 = vmatprep.mubr.bf16.mxu0 0
    %2614 = vmatmul.mubr.bf16.gmra.mrb[0].mxu0 %v2509
    %v2615 = vpop.f32.mrb[0].mxu0
    %v2616 = vadd.f32 %v2531, %v2615
    %v2617 = vpop.f32.mrb[0].mxu0
    %v2618 = vpop.f32.mrb[0].mxu0
    %v2619 = vpop.f32.mrb[0].mxu0
    %2620 = vdwg.mxu0
    %v2621 = vmax.f32 %v2616, 0.0
    %v2622 = vpack.c.bf16 %v2621, %v2621
    %v2623 = vld [vmem:[#allocation11] sm:$0xf]
    %v2624 = vld [vmem:[#allocation11 + $0x4] sm:$0xf]
    %v2625 = vld [vmem:[#allocation11 + $0x8] sm:$0xf]
    %v2626 = vld [vmem:[#allocation11 + $0xc] sm:$0xf]
    %v2627 = vld [vmem:[#allocation11 + $0x10] sm:$0xf]
    %v2628 = vld [vmem:[#allocation11 + $0x14] sm:$0xf]
    %v2629 = vld [vmem:[#allocation11 + $0x18] sm:$0xf]
    %v2630 = vld [vmem:[#allocation11 + $0x1c] sm:$0xf]
    %v2631 = vld [vmem:[#allocation11 + $0x20] sm:$0xf]
    %v2632 = vld [vmem:[#allocation11 + $0x24] sm:$0xf]
    %v2633 = vld [vmem:[#allocation11 + $0x28] sm:$0xf]
    %v2634 = vld [vmem:[#allocation11 + $0x2c] sm:$0xf]
    %v2635 = vld [vmem:[#allocation11 + $0x30] sm:$0xf]
    %v2636 = vld [vmem:[#allocation11 + $0x34] sm:$0xf]
    %v2637 = vld [vmem:[#allocation11 + $0x38] sm:$0xf]
    %v2638 = vld [vmem:[#allocation11 + $0x3c] sm:$0xf]
    %v2639 = vld [vmem:[%s10] sm:$0x1]
    %v2641 = vlaneseq
    %v2642 = vshrl.u32 %v2641, 7
    %v2643 = vsub.s32 0, %v2642
    %v2644 = vrot.slane %v2639, %v2643
    %v2662 = vunpack.c.l.b16 %v2623
    %v2663 = vunpack.c.l.b16 %v2624
    %v2664 = vunpack.c.l.b16 %v2625
    %v2665 = vunpack.c.l.b16 %v2626
    %v2666 = vunpack.c.l.b16 %v2627
    %v2667 = vunpack.c.l.b16 %v2628
    %v2668 = vunpack.c.l.b16 %v2629
    %v2669 = vunpack.c.l.b16 %v2630
    %v2670 = vunpack.c.l.b16 %v2631
    %v2671 = vunpack.c.l.b16 %v2632
    %v2672 = vunpack.c.l.b16 %v2633
    %v2673 = vunpack.c.l.b16 %v2634
    %v2674 = vunpack.c.l.b16 %v2635
    %v2675 = vunpack.c.l.b16 %v2636
    %v2676 = vunpack.c.l.b16 %v2637
    %v2677 = vunpack.c.l.b16 %v2638
    %v2678 = vpack.c.b16 %v2663, %v2662
    %v2679 = vpack.c.b16 %v2665, %v2664
    %v2680 = vpack.c.b16 %v2667, %v2666
    %v2681 = vpack.c.b16 %v2669, %v2668
    %v2682 = vpack.c.b16 %v2671, %v2670
    %v2683 = vpack.c.b16 %v2673, %v2672
    %v2684 = vpack.c.b16 %v2675, %v2674
    %v2685 = vpack.c.b16 %v2677, %v2676
    %2694 = vmatprep.subr.bf16.mxu0 0
    %2695 = vmatpush1.bf16.msra.mxu0 %v2678
    %2696 = vmatprep.subr.bf16.mxu0 0
    %2697 = vmatpush1.bf16.msra.mxu0 %v2679
    %2698 = vmatprep.subr.bf16.mxu0 0
    %2699 = vmatpush1.bf16.msra.mxu0 %v2680
    %2700 = vmatprep.subr.bf16.mxu0 0
    %2701 = vmatpush1.bf16.msra.mxu0 %v2681
    %2702 = vmatprep.subr.bf16.mxu0 0
    %2703 = vmatpush1.bf16.msra.mxu0 %v2682
    %2704 = vmatprep.subr.bf16.mxu0 0
    %2705 = vmatpush1.bf16.msra.mxu0 %v2683
    %2706 = vmatprep.subr.bf16.mxu0 0
    %2707 = vmatpush1.bf16.msra.mxu0 %v2684
    %2708 = vmatprep.subr.bf16.mxu0 0
    %2709 = vmatpush1.bf16.msra.mxu0 %v2685
    %2710 = vmatprep.subr.bf16.mxu0 0
    %2711 = vmatpush1.bf16.msra.mxu0 0
    %2712 = vmatprep.subr.bf16.mxu0 0
    %2713 = vmatpush1.bf16.msra.mxu0 0
    %2714 = vmatprep.subr.bf16.mxu0 0
    %2715 = vmatpush1.bf16.msra.mxu0 0
    %2716 = vmatprep.subr.bf16.mxu0 0
    %2717 = vmatpush1.bf16.msra.mxu0 0
    %2718 = vmatprep.subr.bf16.mxu0 0
    %2719 = vmatpush1.bf16.msra.mxu0 0
    %2720 = vmatprep.subr.bf16.mxu0 0
    %2721 = vmatpush1.bf16.msra.mxu0 0
    %2722 = vmatprep.subr.bf16.mxu0 0
    %2723 = vmatpush1.bf16.msra.mxu0 0
    %2724 = vmatprep.subr.bf16.mxu0 0
    %2725 = vmatpush1.bf16.msra.mxu0 0
    %2726 = vmatprep.mubr.bf16.mxu0 0
    %2727 = vmatmul.mubr.bf16.gmra.mrb[0].mxu0 %v2622
    %v2728 = vpop.f32.mrb[0].mxu0
    %v2729 = vadd.f32 %v2644, %v2728
    %v2730 = vpop.f32.mrb[0].mxu0
    %v2731 = vpop.f32.mrb[0].mxu0
    %v2732 = vpop.f32.mrb[0].mxu0
    %2733 = vdwg.mxu0
    %2734 = vmax.xlane.f32.xlu0 %v2729
    %v2735 = vpop.xlane.xlu0 %2734
    %v2736 = vsub.f32 %v2729, %v2735
    %v2737 = vmul.f32 %v2736, 1.442695
    %v2738 = vpow.pop %v2737
    %2739 = vadd.xlane.f32.xlu0 %v2738
    %v2740 = vpop.xlane.xlu0 %2739
    %v2741 = vlog2.pop %v2740
    %v2742 = vmul.f32 %v2741, 0.6931472
    %v2743 = vsub.f32 %v2736, %v2742
    %2744 = vst [vmem:[#allocation13] sm:$0xff] %v2743
    // Predicated region
    $region70: #{tpu_custom_call.1} parent=1 // pred_check
      _
    $region71: #{tpu_custom_call.1} parent=1 // pred_check_branch
      %2746 = sbr.rel (0) target = $region73
    $region72: #{tpu_custom_call.1} parent=1 // pred_region
      %s2748 = ssub.s32 128, 128
      %2749 = vsyncadd [#allocation4], %s2748
      %s2751 = sshll.u32 [#allocation13], 4
      %s2752 = int_to_ptr.vmem [resolvable:$true] %s2751
      %2754 = dma.vmem_to_hbm [thread:$0]  %s2752, 128, %s11, [#allocation4]
    $region73: #{tpu_custom_call.1} parent=1 // pred_fallthru
      _
    // Predicated region
    $region74: #{tpu_custom_call.1} parent=1 // pred_check
      _
    $region75: #{tpu_custom_call.1} parent=1 // pred_check_branch
      %2756 = sbr.rel (0) target = $region77
    $region76: #{tpu_custom_call.1} parent=1 // pred_region
      %2757 = dma.done [#allocation4], 128
    $region77: #{tpu_custom_call.1} parent=1 // pred_fallthru
      _
    %2758 = vsyncpa [#allocation3], 1
    %2759 = vsyncpa [#allocation6], 1
    %2760 = vsyncpa [#allocation9], 1
    %2761 = vsyncpa [#allocation12], 1
    %2762 = vsyncpa [#allocation4], 1

</llo_original>
